<compile_context>
chip_gen: v5e
topology: v5e:2x2
jax: 0.10.0
libtpu: 0.0.40
codegen_flags: <defaults>
</compile_context>

<pallas_src>
import math
import functools

import jax
import jax.numpy as jnp
from jax.experimental import pallas as pl
from jax.experimental.pallas import tpu as pltpu


def _mha_kernel(x_ref, wqkv_ref, bqkv_ref, wo_ref, bo_ref, o_ref, *, num_heads: int):
    # x_ref block: (1, T, E) bf16; wqkv_ref: (E, 3E) bf16; bqkv_ref: (1, 3E) f32;
    # wo_ref: (E, E) bf16; bo_ref: (1, E) f32; o_ref block: (1, T, E) f32.
    x = x_ref[0]                                   # (T, E) bf16
    T, E = x.shape
    H = num_heads
    D = E // H
    scale = 1.0 / math.sqrt(D)

    # Fused QKV projection: one MXU push with 3x wider N, f32 accumulation.
    qkv = jnp.dot(x, wqkv_ref[...], preferred_element_type=jnp.float32) + bqkv_ref[...]
    # Pre-scale q (torch scales q before the score matmul as well).
    q = (qkv[:, 0 * E:1 * E] * scale).reshape(T, H, D)
    k = qkv[:, 1 * E:2 * E].reshape(T, H, D)
    v = qkv[:, 2 * E:3 * E].reshape(T, H, D)

    # Heads-batched score matmul (batch dim = H, contraction = D); bf16 in, f32 out.
    s = jnp.einsum("qhd,khd->hqk",
                   q.astype(jnp.bfloat16), k.astype(jnp.bfloat16),
                   preferred_element_type=jnp.float32)            # (H, T, T) f32

    # Causal mask generated in-kernel — removes the O(T^2) mask DMA and its VMEM
    # buffer. Shared across heads via broadcasting; large finite negative (not -inf)
    # keeps the softmax NaN-safe.
    row = jax.lax.broadcasted_iota(jnp.int32, (T, T), 0)
    col = jax.lax.broadcasted_iota(jnp.int32, (T, T), 1)
    s = jnp.where((col <= row)[None, :, :], s, -1e30)

    # Numerically-stable softmax in f32; approx reciprocal runs on the EUP slot.
    s = s - jnp.max(s, axis=-1, keepdims=True)
    p = jnp.exp(s)
    p = p * pl.reciprocal(jnp.sum(p, axis=-1, keepdims=True), approx=True)

    # PV matmul producing (T, H, D) directly: the reshape to (T, E) is contiguous,
    # so no cross-lane concatenation of per-head slices is needed.
    ctx = jnp.einsum("hqk,khd->qhd",
                     p.astype(jnp.bfloat16), v.astype(jnp.bfloat16),
                     preferred_element_type=jnp.float32).reshape(T, E)

    y = jnp.dot(ctx.astype(jnp.bfloat16), wo_ref[...],
                preferred_element_type=jnp.float32) + bo_ref[...]
    o_ref[0] = y.astype(o_ref.dtype)


def causal_self_attention(x, params, num_heads):
    """x: (B, T, E) float32.  Returns (B, T, E), matching
    torch.nn.MultiheadAttention(batch_first=True) with a causal attn_mask,
    key_padding_mask=None and dropout=0."""
    # TODO(synk): key_padding_mask (`padding` argument) not supported; only padding=None.
    # TODO(synk): for long sequences (T >~ 512) add a query-tile grid axis with
    # flash-style online softmax (VMEM O(tq*T_kv) instead of O(T^2)) and raise
    # vmem_limit_bytes; current whole-sequence block is the right shape for short T.
    B, T, E = x.shape

    # Fuse Q/K/V weights into one (E, 3E) operand (Linear (out,in) -> (in,out)
    # transpose) and cast matmul operands to bf16; keep biases in f32.
    w_qkv = jnp.concatenate(
        [params["wq"].T, params["wk"].T, params["wv"].T], axis=1).astype(jnp.bfloat16)
    b_qkv = jnp.concatenate(
        [params["bq"], params["bk"], params["bv"]]).reshape(1, 3 * E).astype(jnp.float32)
    w_o = params["wo"].T.astype(jnp.bfloat16)
    b_o = params["bo"].reshape(1, E).astype(jnp.float32)
    x_bf = x.astype(jnp.bfloat16)

    full = lambda shape: pl.BlockSpec(shape, lambda b: (0,) * len(shape))

    kernel = functools.partial(_mha_kernel, num_heads=num_heads)
    return pl.pallas_call(
        kernel,
        out_shape=jax.ShapeDtypeStruct((B, T, E), x.dtype),
        grid_spec=pltpu.PrefetchScalarGridSpec(
            num_scalar_prefetch=0,
            grid=(B,),   # batch axis: "parallel" -> megacore split on v7x.
            in_specs=[
                pl.BlockSpec((1, T, E), lambda b: (b, 0, 0)),    # x
                full((E, 3 * E)),                                # fused QKV weight
                full((1, 3 * E)),                                # fused QKV bias
                full((E, E)),                                    # output proj weight
                full((1, E)),                                    # output proj bias
            ],
            out_specs=pl.BlockSpec((1, T, E), lambda b: (b, 0, 0)),
        ),
        compiler_params=pltpu.CompilerParams(
            dimension_semantics=("parallel",),
        ),
    )(x_bf, w_qkv, b_qkv, w_o, b_o)


def reference_mha(x, params, num_heads, causal_mask):
    """Plain-JAX f32 reference mirroring torch.nn.MultiheadAttention forward."""
    B, T, E = x.shape
    D = E // num_heads
    q = x @ params["wq"].T + params["bq"]
    k = x @ params["wk"].T + params["bk"]
    v = x @ params["wv"].T + params["bv"]
    def split(a):
        return a.reshape(B, T, num_heads, D).transpose(0, 2, 1, 3)  # (B, H, T, D)
    qh, kh, vh = split(q), split(k), split(v)
    scores = jnp.einsum("bhtd,bhsd->bhts", qh, kh) / math.sqrt(D)
    scores = scores + causal_mask[:T, :T][None, None]
    p = jax.nn.softmax(scores, axis=-1)
    o = jnp.einsum("bhts,bhsd->bhtd", p, vh).transpose(0, 2, 1, 3).reshape(B, T, E)
    return o @ params["wo"].T + params["bo"]


def init_params(key, embed_dim):
    # torch.nn.MultiheadAttention: in_proj_weight (3E, E) xavier_uniform, biases zero,
    # out_proj.weight (E, E). Deterministic synthetic init here.
    kq, kk, kv, ko = jax.random.split(key, 4)
    limit = math.sqrt(6.0 / (2 * embed_dim))
    uni = lambda k: jax.random.uniform(k, (embed_dim, embed_dim), jnp.float32, -limit, limit)
    return {
        "wq": uni(kq), "wk": uni(kk), "wv": uni(kv), "wo": uni(ko),
        "bq": jnp.zeros((embed_dim,), jnp.float32),
        "bk": jnp.zeros((embed_dim,), jnp.float32),
        "bv": jnp.zeros((embed_dim,), jnp.float32),
        "bo": jnp.zeros((embed_dim,), jnp.float32),
    }


if __name__ == "__main__":
    B, T, E, H = 2, 8, 32, 4
    MAX_LEN = 16

    key = jax.random.PRNGKey(0)
    kx, kp = jax.random.split(key)
    x = jax.random.normal(kx, (B, T, E), jnp.float32)
    params = init_params(kp, E)

    # self.mask = triu(full((L, L), -inf), diagonal=1): used by the f32 reference only;
    # the kernel generates the causal mask in-VMEM via broadcasted_iota.
    causal_mask = jnp.triu(jnp.full((MAX_LEN, MAX_LEN), -jnp.inf, jnp.float32), k=1)

    y = causal_self_attention(x, params, H)
    y = jax.block_until_ready(y)

    y_ref = reference_mha(x, params, H, causal_mask)
    assert y.shape == (B, T, E)
    # Tolerance loosened vs the f32 reference because matmul operands run in bf16
    # (f32 accumulation); structural errors would be orders of magnitude larger.
    assert jnp.allclose(y, y_ref, atol=5e-2, rtol=5e-2), "mismatch vs reference"

    print("KERNEL_OK")
</pallas_src>

<mosaic_0001>
module attributes {stable_mosaic.version = 11 : i64} {
  func.func @_mha_kernel(%arg0: i32, %arg1: memref<1x8x32xbf16, #tpu.memory_space<vmem>>, %arg2: memref<32x96xbf16, #tpu.memory_space<vmem>>, %arg3: memref<1x96xf32, #tpu.memory_space<vmem>>, %arg4: memref<32x32xbf16, #tpu.memory_space<vmem>>, %arg5: memref<1x32xf32, #tpu.memory_space<vmem>>, %arg6: memref<1x8x32xf32, #tpu.memory_space<vmem>>) attributes {dimension_semantics = [#tpu.dimension_semantics<parallel>], iteration_bounds = array<i64: 2>, scalar_prefetch = 0 : i64, scratch_operands = 0 : i64, tpu.core_type = #tpu.core_type<tc>, window_params = [{transform_indices = @transform_0, window_bounds = array<i64: 1, 8, 32>}, {pipeline_mode = #tpu.pipeline_mode<synchronous>, transform_indices = @transform_1, window_bounds = array<i64: 32, 96>}, {pipeline_mode = #tpu.pipeline_mode<synchronous>, transform_indices = @transform_2, window_bounds = array<i64: 1, 96>}, {pipeline_mode = #tpu.pipeline_mode<synchronous>, transform_indices = @transform_3, window_bounds = array<i64: 32, 32>}, {pipeline_mode = #tpu.pipeline_mode<synchronous>, transform_indices = @transform_4, window_bounds = array<i64: 1, 32>}, {transform_indices = @transform_5, window_bounds = array<i64: 1, 8, 32>}]} {
    %c0 = arith.constant 0 : index
    %c0_0 = arith.constant 0 : index
    %c0_1 = arith.constant 0 : index
    %0 = vector.load %arg1[%c0, %c0_0, %c0_1] : memref<1x8x32xbf16, #tpu.memory_space<vmem>>, vector<1x8x32xbf16>
    %1 = vector.shape_cast %0 : vector<1x8x32xbf16> to vector<8x32xbf16>
    %c0_2 = arith.constant 0 : index
    %c0_3 = arith.constant 0 : index
    %2 = vector.load %arg2[%c0_2, %c0_3] : memref<32x96xbf16, #tpu.memory_space<vmem>>, vector<32x96xbf16>
    %cst = arith.constant dense<0.000000e+00> : vector<8x96xf32>
    %3 = tpu.matmul %1, %2, %cst {dimension_numbers = #tpu.dot_dimension_numbers<[1], [0], [0], [1], [0, 0, 1, 1], [], []>} : vector<8x32xbf16>, vector<32x96xbf16>, vector<8x96xf32> -> vector<8x96xf32>
    %c0_4 = arith.constant 0 : index
    %c0_5 = arith.constant 0 : index
    %4 = vector.load %arg3[%c0_4, %c0_5] : memref<1x96xf32, #tpu.memory_space<vmem>>, vector<1x96xf32>
    %5 = vector.broadcast %4 : vector<1x96xf32> to vector<8x96xf32>
    %6 = arith.addf %3, %5 : vector<8x96xf32>
    %7 = vector.extract_strided_slice %6 {offsets = [0, 0], sizes = [8, 32], strides = [1, 1]} : vector<8x96xf32> to vector<8x32xf32>
    %cst_6 = arith.constant 0.353553385 : f32
    %8 = vector.broadcast %cst_6 : f32 to vector<8x32xf32>
    %9 = arith.mulf %7, %8 : vector<8x32xf32>
    %10 = vector.shape_cast %9 : vector<8x32xf32> to vector<8x4x8xf32>
    %11 = vector.extract_strided_slice %6 {offsets = [0, 32], sizes = [8, 32], strides = [1, 1]} : vector<8x96xf32> to vector<8x32xf32>
    %12 = vector.shape_cast %11 : vector<8x32xf32> to vector<8x4x8xf32>
    %13 = vector.extract_strided_slice %6 {offsets = [0, 64], sizes = [8, 32], strides = [1, 1]} : vector<8x96xf32> to vector<8x32xf32>
    %14 = vector.shape_cast %13 : vector<8x32xf32> to vector<8x4x8xf32>
    %15 = arith.truncf %10 : vector<8x4x8xf32> to vector<8x4x8xbf16>
    %16 = arith.truncf %12 : vector<8x4x8xf32> to vector<8x4x8xbf16>
    "tpu.trace_start"() <{level = 10 : i32, message = "qhd,khd->hqk"}> : () -> ()
    %cst_7 = arith.constant dense<0.000000e+00> : vector<4x8x8xf32>
    %17 = tpu.matmul %15, %16, %cst_7 {dimension_numbers = #tpu.dot_dimension_numbers<[2], [2], [0], [0], [0, 1, 0, 0, 1, 0], [1], [1]>} : vector<8x4x8xbf16>, vector<8x4x8xbf16>, vector<4x8x8xf32> -> vector<4x8x8xf32>
    "tpu.trace_stop"() : () -> ()
    %18 = tpu.iota {dimensions = array<i32: 0>} : vector<8x8xi32>
    %19 = tpu.iota {dimensions = array<i32: 1>} : vector<8x8xi32>
    %20 = arith.cmpi sle, %19, %18 : vector<8x8xi32>
    %21 = vector.shape_cast %20 : vector<8x8xi1> to vector<1x8x8xi1>
    %cst_8 = arith.constant -1.000000e+30 : f32
    %22 = vector.shape_cast %21 : vector<1x8x8xi1> to vector<1x8x8xi1>
    %23 = vector.broadcast %22 : vector<1x8x8xi1> to vector<4x8x8xi1>
    %24 = vector.broadcast %cst_8 : f32 to vector<4x8x8xf32>
    %25 = arith.select %23, %17, %24 : vector<4x8x8xi1>, vector<4x8x8xf32>
    %cst_9 = arith.constant dense<0xFF800000> : vector<4x8xf32>
    %26 = vector.multi_reduction <maximumf>, %25, %cst_9 [2] : vector<4x8x8xf32> to vector<4x8xf32>
    %27 = vector.shape_cast %26 : vector<4x8xf32> to vector<4x8x1xf32>
    %28 = vector.broadcast %27 : vector<4x8x1xf32> to vector<4x8x8xf32>
    %29 = arith.subf %25, %28 : vector<4x8x8xf32>
    %30 = math.exp %29 : vector<4x8x8xf32>
    %cst_10 = arith.constant dense<0.000000e+00> : vector<4x8xf32>
    %31 = vector.multi_reduction <add>, %30, %cst_10 [2] : vector<4x8x8xf32> to vector<4x8xf32>
    %32 = vector.shape_cast %31 : vector<4x8xf32> to vector<4x8x1xf32>
    %33 = tpu.reciprocal %32 {approx = true} : vector<4x8x1xf32> -> vector<4x8x1xf32>
    %34 = vector.broadcast %33 : vector<4x8x1xf32> to vector<4x8x8xf32>
    %35 = arith.mulf %30, %34 : vector<4x8x8xf32>
    %36 = arith.truncf %35 : vector<4x8x8xf32> to vector<4x8x8xbf16>
    %37 = arith.truncf %14 : vector<8x4x8xf32> to vector<8x4x8xbf16>
    "tpu.trace_start"() <{level = 10 : i32, message = "hqk,khd->qhd"}> : () -> ()
    %cst_11 = arith.constant dense<0.000000e+00> : vector<4x8x8xf32>
    %38 = tpu.matmul %37, %36, %cst_11 {dimension_numbers = #tpu.dot_dimension_numbers<[0], [2], [2], [1], [0, 1, 0, 2, 1, 1], [1], [0]>} : vector<8x4x8xbf16>, vector<4x8x8xbf16>, vector<4x8x8xf32> -> vector<4x8x8xf32>
    %39 = tpu.transpose %38, [2, 0, 1] : vector<4x8x8xf32> -> vector<8x4x8xf32>
    "tpu.trace_stop"() : () -> ()
    %40 = vector.shape_cast %39 : vector<8x4x8xf32> to vector<8x32xf32>
    %41 = arith.truncf %40 : vector<8x32xf32> to vector<8x32xbf16>
    %c0_12 = arith.constant 0 : index
    %c0_13 = arith.constant 0 : index
    %42 = vector.load %arg4[%c0_12, %c0_13] : memref<32x32xbf16, #tpu.memory_space<vmem>>, vector<32x32xbf16>
    %cst_14 = arith.constant dense<0.000000e+00> : vector<8x32xf32>
    %43 = tpu.matmul %41, %42, %cst_14 {dimension_numbers = #tpu.dot_dimension_numbers<[1], [0], [0], [1], [0, 0, 1, 1], [], []>} : vector<8x32xbf16>, vector<32x32xbf16>, vector<8x32xf32> -> vector<8x32xf32>
    %c0_15 = arith.constant 0 : index
    %c0_16 = arith.constant 0 : index
    %44 = vector.load %arg5[%c0_15, %c0_16] : memref<1x32xf32, #tpu.memory_space<vmem>>, vector<1x32xf32>
    %45 = vector.broadcast %44 : vector<1x32xf32> to vector<8x32xf32>
    %46 = arith.addf %43, %45 : vector<8x32xf32>
    %c0_17 = arith.constant 0 : index
    %c0_18 = arith.constant 0 : index
    %c0_19 = arith.constant 0 : index
    %47 = vector.load %arg6[%c0_17, %c0_18, %c0_19] : memref<1x8x32xf32, #tpu.memory_space<vmem>>, vector<1x8x32xf32>
    %48 = vector.shape_cast %47 : vector<1x8x32xf32> to vector<8x32xf32>
    %49 = vector.shape_cast %46 : vector<8x32xf32> to vector<1x8x32xf32>
    tpu.vector_store %arg6[%c0_17, %c0_18, %c0_19], %49 {strides = array<i32>} : memref<1x8x32xf32, #tpu.memory_space<vmem>>, vector<1x8x32xf32>,
    return
  }
  func.func @transform_0(%arg0: i32) -> (i32, i32, i32) {
    %c0_i32 = arith.constant 0 : i32
    %c0_i32_0 = arith.constant 0 : i32
    %c0_i32_1 = arith.constant 0 : i32
    return %arg0, %c0_i32, %c0_i32_0 : i32, i32, i32
  }
  func.func @transform_1(%arg0: i32) -> (i32, i32) {
    %c0_i32 = arith.constant 0 : i32
    %c0_i32_0 = arith.constant 0 : i32
    %c0_i32_1 = arith.constant 0 : i32
    return %c0_i32, %c0_i32_0 : i32, i32
  }
  func.func @transform_2(%arg0: i32) -> (i32, i32) {
    %c0_i32 = arith.constant 0 : i32
    %c0_i32_0 = arith.constant 0 : i32
    %c0_i32_1 = arith.constant 0 : i32
    return %c0_i32, %c0_i32_0 : i32, i32
  }
  func.func @transform_3(%arg0: i32) -> (i32, i32) {
    %c0_i32 = arith.constant 0 : i32
    %c0_i32_0 = arith.constant 0 : i32
    %c0_i32_1 = arith.constant 0 : i32
    return %c0_i32, %c0_i32_0 : i32, i32
  }
  func.func @transform_4(%arg0: i32) -> (i32, i32) {
    %c0_i32 = arith.constant 0 : i32
    %c0_i32_0 = arith.constant 0 : i32
    %c0_i32_1 = arith.constant 0 : i32
    return %c0_i32, %c0_i32_0 : i32, i32
  }
  func.func @transform_5(%arg0: i32) -> (i32, i32, i32) {
    %c0_i32 = arith.constant 0 : i32
    %c0_i32_0 = arith.constant 0 : i32
    %c0_i32_1 = arith.constant 0 : i32
    return %arg0, %c0_i32, %c0_i32_0 : i32, i32, i32
  }
}

</mosaic_0001>

<llo_original>
// kernel: tpu_custom_call.1
$region0: #{tpu_custom_call.1}
  #allocation0 [shape = 'u32[]', space=smem, size = 0x4, offset = 0x4, fixed_abs, tag = 'smem constant byte address 0x4 - core index']
  #allocation1 [shape = 'u32[72,128]{1,0:T(1,128)}', space=vmem, size = 0x9000, scoped, tag = 'internal scratch']
  %s0 = inlined_call_operand.hbm [shape: bf16[2,8,32], index: 0, kind: input, shape index: {}]
  %s1 = inlined_call_operand.hbm [shape: bf16[32,96], index: 1, kind: input, shape index: {}]
  %s2 = inlined_call_operand.vmem [shape: f32[1,96], index: 2, kind: input, shape index: {}]
  %s3 = inlined_call_operand.hbm [shape: bf16[32,32], index: 3, kind: input, shape index: {}]
  %s4 = inlined_call_operand.vmem [shape: f32[1,32], index: 4, kind: input, shape index: {}]
  %s5 = inlined_call_operand.hbm [shape: f32[2,8,32], index: 5, kind: output, shape index: {}]
  %s6 = sld [smem:[#allocation0]]
  $region65: #{tpu_custom_call.1} parent=0
    _
  %s8 = ssub.s32 1, %s6
  %s9 = scalar_select 0, %s8, %s6
  $region1: #{tpu_custom_call.1} parent=0
    #allocation2 [shape = 'u8[4096]{0}', space=vmem, size = 0x1000, scoped, tag = 'input window, operand 0']
    #allocation3 [shape = 's32[2]{0}', space=sflag, size = 0x8, scoped, tag = 'scoped memory for tpu_custom_call.1']
    #allocation4 [shape = 's32[2]{0}', space=sflag, size = 0x8, scoped, tag = 'scoped memory for tpu_custom_call.1']
    #allocation5 [shape = 'u8[8192]{0}', space=vmem, size = 0x2000, scoped, tag = 'input window, operand 1, single buffered']
    #allocation6 [shape = 's32[1]{0}', space=sflag, size = 0x4, scoped, tag = 'scoped memory for tpu_custom_call.1']
    #allocation7 [shape = 'u8[8192]{0}', space=vmem, size = 0x2000, scoped, tag = 'input window, operand 3, single buffered']
    #allocation8 [shape = 'u8[8192]{0}', space=vmem, size = 0x2000, scoped, tag = 'output window, operand 0']
    %10 = vsyncpa [#allocation3], 0
    %s11 = scalar_lea.sflag [#allocation3], 1
    %12 = vsyncpa %s11, 0
    %13 = vsyncpa [#allocation6], 0
    %14 = vsyncpa [#allocation4], 0
    %s15 = scalar_lea.sflag [#allocation4], 1
    %16 = vsyncpa %s15, 0
    loop: start=0, step=1, limit=4
    $region2: #{tpu_custom_call.1} parent=1 // loop_pre_header
      _
    $region3: #{tpu_custom_call.1} parent=1 // loop_header
      %s18 = sphi 0, %s22
      %p19 = scmp.ge.s32.totalorder %s18, 4
      %s28 = sphi 0, %s30
      %s31 = sphi 0, %s28
      %s32 = sphi 0, %s31
      %s48 = sphi 0, %s32
      %s52 = sphi 0, %s52
      %s54 = sphi 0, %s52
      %s55 = sphi 0, %s54
      %s69 = sphi 0, %s55
      %s73 = sphi 0, %s73
      %s75 = sphi 0, %s73
      %s76 = sphi 0, %s75
      %s90 = sphi 0, %s76
      %s94 = sphi 0, %s94
      %s96 = sphi 0, %s94
      %s97 = sphi 0, %s96
      %s111 = sphi 0, %s97
      %s115 = sphi 0, %s115
      %s117 = sphi 0, %s115
      %s118 = sphi 0, %s117
      %s132 = sphi 0, %s118
      %s138 = sphi 0, %s140
      %s141 = sphi 0, %s138
      %s142 = sphi 0, %s141
      %s158 = sphi 0, %s142
    $region4: #{tpu_custom_call.1} parent=1 // loop_header_branch
      %21 = sbr.rel (%p19) target = $region8
    $region5: #{tpu_custom_call.1} parent=1 // loop_body
      %s23 = ssub.s32 %s18, 1
      %s24 = ssub.s32 %s18, 2
      %s25 = sadd.s32 %s18, 1
      %s26 = ssub.s32 %s18, %s25
      %p27 = scmp.eq.s32.totalorder %s26, 0
      %s29 = sadd.s32 %s28, 1
      %s30 = scalar_select %p27, %s28, %s29
      %p33 = pneg %p27
      %p34 = scmp.eq.s32.totalorder %s18, 1
      %p35 = por %p33, %p34
      %p36 = scmp.ne.s32.totalorder %s28, %s31
      %p37 = scmp.eq.s32.totalorder %s18, 0
      %p38 = por %p36, %p37
      %p39 = scmp.ne.s32.totalorder %s28, %s31
      %p40 = scmp.eq.s32.totalorder %s23, 1
      %p41 = por %p39, %p40
      %p42 = scmp.ne.s32.totalorder %s31, %s32
      %p43 = scmp.eq.s32.totalorder %s23, 0
      %p44 = por %p42, %p43
      %p45 = scmp.ne.s32.totalorder %s31, %s32
      %p46 = scmp.eq.s32.totalorder %s24, 1
      %p47 = por %p45, %p46
      %p49 = scmp.ne.s32.totalorder %s32, %s48
      %p50 = scmp.eq.s32.totalorder %s24, 0
      %p51 = por %p49, %p50
      %s53 = sadd.s32 %s52, 1
      %p56 = scmp.eq.s32.totalorder %s18, 1
      %p57 = scmp.ne.s32.totalorder %s52, %s54
      %p58 = scmp.eq.s32.totalorder %s18, 0
      %p59 = por %p57, %p58
      %p60 = scmp.ne.s32.totalorder %s52, %s54
      %p61 = scmp.eq.s32.totalorder %s23, 1
      %p62 = por %p60, %p61
      %p63 = scmp.ne.s32.totalorder %s54, %s55
      %p64 = scmp.eq.s32.totalorder %s23, 0
      %p65 = por %p63, %p64
      %p66 = scmp.ne.s32.totalorder %s54, %s55
      %p67 = scmp.eq.s32.totalorder %s24, 1
      %p68 = por %p66, %p67
      %p70 = scmp.ne.s32.totalorder %s55, %s69
      %p71 = scmp.eq.s32.totalorder %s24, 0
      %p72 = por %p70, %p71
      %s74 = sadd.s32 %s73, 1
      %p77 = scmp.eq.s32.totalorder %s18, 1
      %p78 = scmp.ne.s32.totalorder %s73, %s75
      %p79 = scmp.eq.s32.totalorder %s18, 0
      %p80 = por %p78, %p79
      %p81 = scmp.ne.s32.totalorder %s73, %s75
      %p82 = scmp.eq.s32.totalorder %s23, 1
      %p83 = por %p81, %p82
      %p84 = scmp.ne.s32.totalorder %s75, %s76
      %p85 = scmp.eq.s32.totalorder %s23, 0
      %p86 = por %p84, %p85
      %p87 = scmp.ne.s32.totalorder %s75, %s76
      %p88 = scmp.eq.s32.totalorder %s24, 1
      %p89 = por %p87, %p88
      %p91 = scmp.ne.s32.totalorder %s76, %s90
      %p92 = scmp.eq.s32.totalorder %s24, 0
      %p93 = por %p91, %p92
      %s95 = sadd.s32 %s94, 1
      %p98 = scmp.eq.s32.totalorder %s18, 1
      %p99 = scmp.ne.s32.totalorder %s94, %s96
      %p100 = scmp.eq.s32.totalorder %s18, 0
      %p101 = por %p99, %p100
      %p102 = scmp.ne.s32.totalorder %s94, %s96
      %p103 = scmp.eq.s32.totalorder %s23, 1
      %p104 = por %p102, %p103
      %p105 = scmp.ne.s32.totalorder %s96, %s97
      %p106 = scmp.eq.s32.totalorder %s23, 0
      %p107 = por %p105, %p106
      %p108 = scmp.ne.s32.totalorder %s96, %s97
      %p109 = scmp.eq.s32.totalorder %s24, 1
      %p110 = por %p108, %p109
      %p112 = scmp.ne.s32.totalorder %s97, %s111
      %p113 = scmp.eq.s32.totalorder %s24, 0
      %p114 = por %p112, %p113
      %s116 = sadd.s32 %s115, 1
      %p119 = scmp.eq.s32.totalorder %s18, 1
      %p120 = scmp.ne.s32.totalorder %s115, %s117
      %p121 = scmp.eq.s32.totalorder %s18, 0
      %p122 = por %p120, %p121
      %p123 = scmp.ne.s32.totalorder %s115, %s117
      %p124 = scmp.eq.s32.totalorder %s23, 1
      %p125 = por %p123, %p124
      %p126 = scmp.ne.s32.totalorder %s117, %s118
      %p127 = scmp.eq.s32.totalorder %s23, 0
      %p128 = por %p126, %p127
      %p129 = scmp.ne.s32.totalorder %s117, %s118
      %p130 = scmp.eq.s32.totalorder %s24, 1
      %p131 = por %p129, %p130
      %p133 = scmp.ne.s32.totalorder %s118, %s132
      %p134 = scmp.eq.s32.totalorder %s24, 0
      %p135 = por %p133, %p134
      %s136 = ssub.s32 %s18, %s25
      %p137 = scmp.eq.s32.totalorder %s136, 0
      %s139 = sadd.s32 %s138, 1
      %s140 = scalar_select %p137, %s138, %s139
      %p143 = pneg %p137
      %p144 = scmp.eq.s32.totalorder %s18, 1
      %p145 = por %p143, %p144
      %p146 = scmp.ne.s32.totalorder %s138, %s141
      %p147 = scmp.eq.s32.totalorder %s18, 0
      %p148 = por %p146, %p147
      %p149 = scmp.ne.s32.totalorder %s138, %s141
      %p150 = scmp.eq.s32.totalorder %s23, 1
      %p151 = por %p149, %p150
      %p152 = scmp.ne.s32.totalorder %s141, %s142
      %p153 = scmp.eq.s32.totalorder %s23, 0
      %p154 = por %p152, %p153
      %p155 = scmp.ne.s32.totalorder %s141, %s142
      %p156 = scmp.eq.s32.totalorder %s24, 1
      %p157 = por %p155, %p156
      %p159 = scmp.ne.s32.totalorder %s142, %s158
      %p160 = scmp.eq.s32.totalorder %s24, 0
      %p161 = por %p159, %p160
      %p162 = scmp.le.s32.totalorder 1, %s18
      %p163 = scmp.lt.s32.totalorder %s18, 3
      %p164 = pnand %p162, %p163
      %p165 = pneg %p164
      // Predicated region
      $region9: #{tpu_custom_call.1} parent=5 // pred_check
        _
      $region10: #{tpu_custom_call.1} parent=5 // pred_check_branch
        %167 = sbr.rel (%p164) target = $region12
      $region11: #{tpu_custom_call.1} parent=5 // pred_region
        %s168 = ssub.s32 %s18, 1
        // Predicated region
        $region13: #{tpu_custom_call.1} parent=11 // pred_check
          %p169 = pneg %p65
        $region14: #{tpu_custom_call.1} parent=11 // pred_check_branch
          %171 = sbr.rel (%p169) target = $region16
        $region15: #{tpu_custom_call.1} parent=11 // pred_region
          %173 = vsyncadd [#allocation6], 0
          %s174 = sshll.u32 %s1, 4
          %s175 = int_to_ptr.hbm [resolvable:$true] %s174
          %s176 = sshll.u32 [#allocation5], 4
          %s177 = int_to_ptr.vmem [resolvable:$true] %s176
          %182 = dma.hbm_to_vmem [thread:$0]  %s175, 256, %s177, [#allocation6], 64, 64, 4
        $region16: #{tpu_custom_call.1} parent=11 // pred_fallthru
          _
        // Predicated region
        $region17: #{tpu_custom_call.1} parent=11 // pred_check
          %p183 = pneg %p86
        $region18: #{tpu_custom_call.1} parent=11 // pred_check_branch
          %185 = sbr.rel (%p183) target = $region20
        $region19: #{tpu_custom_call.1} parent=11 // pred_region
          _
        $region20: #{tpu_custom_call.1} parent=11 // pred_fallthru
          _
        // Predicated region
        $region21: #{tpu_custom_call.1} parent=11 // pred_check
          %p186 = pneg %p107
        $region22: #{tpu_custom_call.1} parent=11 // pred_check_branch
          %188 = sbr.rel (%p186) target = $region24
        $region23: #{tpu_custom_call.1} parent=11 // pred_region
          %190 = vsyncadd [#allocation6], 0
          %s191 = sshll.u32 %s3, 4
          %s192 = int_to_ptr.hbm [resolvable:$true] %s191
          %s193 = sshll.u32 [#allocation7], 4
          %s194 = int_to_ptr.vmem [resolvable:$true] %s193
          %199 = dma.hbm_to_vmem [thread:$0]  %s192, 256, %s194, [#allocation6], 64, 64, 4
        $region24: #{tpu_custom_call.1} parent=11 // pred_fallthru
          _
        // Predicated region
        $region25: #{tpu_custom_call.1} parent=11 // pred_check
          %p200 = pneg %p128
        $region26: #{tpu_custom_call.1} parent=11 // pred_check_branch
          %202 = sbr.rel (%p200) target = $region28
        $region27: #{tpu_custom_call.1} parent=11 // pred_region
          _
        $region28: #{tpu_custom_call.1} parent=11 // pred_fallthru
          _
      $region12: #{tpu_custom_call.1} parent=5 // pred_fallthru
        _
      %p203 = scmp.lt.s32.totalorder %s18, 2
      // Predicated region
      $region29: #{tpu_custom_call.1} parent=5 // pred_check
        %p204 = pneg %p203
      $region30: #{tpu_custom_call.1} parent=5 // pred_check_branch
        %206 = sbr.rel (%p204) target = $region32
      $region31: #{tpu_custom_call.1} parent=5 // pred_region
        // Predicated region
        $region33: #{tpu_custom_call.1} parent=31 // pred_check
          %p207 = pneg %p38
        $region34: #{tpu_custom_call.1} parent=31 // pred_check_branch
          %209 = sbr.rel (%p207) target = $region36
        $region35: #{tpu_custom_call.1} parent=31 // pred_region
          %s210 = sand.u32 %s28, 1
          %s211 = scalar_lea.sflag [#allocation3], %s210
          %s212 = sand.u32 %s28, 1
          %s213 = smul.addr %s212, 4
          %s214 = scalar_lea.vmem [#allocation2], %s213
          %216 = vsyncadd %s211, 0
          %s217 = smul.addr %s18, 4
          %s218 = scalar_lea.hbm %s0, %s217
          %s220 = sshll.u32 %s218, 4
          %s221 = int_to_ptr.hbm [resolvable:$true] %s220
          %s222 = sshll.u32 %s214, 4
          %s223 = int_to_ptr.vmem [resolvable:$true] %s222
          %225 = dma.hbm_to_vmem [thread:$0]  %s221, 64, %s223, %s211
        $region36: #{tpu_custom_call.1} parent=31 // pred_fallthru
          _
      $region32: #{tpu_custom_call.1} parent=5 // pred_fallthru
        _
      %p226 = scmp.le.s32.totalorder 1, %s18
      %p227 = scmp.lt.s32.totalorder %s18, 3
      %p228 = pnand %p226, %p227
      %p229 = pneg %p228
      // Predicated region
      $region37: #{tpu_custom_call.1} parent=5 // pred_check
        _
      $region38: #{tpu_custom_call.1} parent=5 // pred_check_branch
        %231 = sbr.rel (%p228) target = $region40
      $region39: #{tpu_custom_call.1} parent=5 // pred_region
        %s232 = ssub.s32 %s18, 1
        %s233 = sand.u32 %s31, 1
        %s234 = scalar_lea.sflag [#allocation3], %s233
        %s235 = sand.u32 %s31, 1
        %s236 = smul.addr %s235, 4
        %s237 = scalar_lea.vmem [#allocation2], %s236
        // Predicated region
        $region41: #{tpu_custom_call.1} parent=39 // pred_check
          %p238 = pneg %p44
        $region42: #{tpu_custom_call.1} parent=39 // pred_check_branch
          %240 = sbr.rel (%p238) target = $region44
        $region43: #{tpu_custom_call.1} parent=39 // pred_region
          %242 = dma.done %s234, 64
        $region44: #{tpu_custom_call.1} parent=39 // pred_fallthru
          _
        // Predicated region
        $region45: #{tpu_custom_call.1} parent=39 // pred_check
          %p243 = pneg %p65
        $region46: #{tpu_custom_call.1} parent=39 // pred_check_branch
          %245 = sbr.rel (%p243) target = $region48
        $region47: #{tpu_custom_call.1} parent=39 // pred_region
          %247 = dma.done [#allocation6], 256
        $region48: #{tpu_custom_call.1} parent=39 // pred_fallthru
          _
        // Predicated region
        $region49: #{tpu_custom_call.1} parent=39 // pred_check
          %p248 = pneg %p107
        $region50: #{tpu_custom_call.1} parent=39 // pred_check_branch
          %250 = sbr.rel (%p248) target = $region52
        $region51: #{tpu_custom_call.1} parent=39 // pred_region
          %252 = dma.done [#allocation6], 256
        $region52: #{tpu_custom_call.1} parent=39 // pred_fallthru
          _
        %s253 = sand.u32 %s31, 1
        %s254 = scalar_lea.sflag [#allocation3], %s253
        %s255 = sand.u32 %s31, 1
        %s256 = smul.addr %s255, 4
        %s257 = scalar_lea.vmem [#allocation2], %s256
        %p258 = pneg %p44
        %p259 = pneg %p41
        %p260 = pneg %p65
        %p261 = pneg %p62
        %p262 = pneg %p86
        %p263 = pneg %p83
        %p264 = pneg %p107
        %p265 = pneg %p104
        %p266 = pneg %p128
        %p267 = pneg %p125
        %p268 = pneg %p154
        %p269 = pneg %p151
        %s270 = sand.u32 %s141, 1
        %s271 = scalar_lea.sflag [#allocation4], %s270
        %s272 = sand.u32 %s141, 1
        %s273 = smul.addr %s272, 8
        %s274 = scalar_lea.vmem [#allocation8], %s273
        %v276 = vld [vmem:[%s237] sm:$0xf]
        %v277 = vld [vmem:[#allocation5] sm:$0xf]
        %v278 = vld [vmem:[#allocation5 + $0x4] sm:$0xf]
        %v279 = vld [vmem:[#allocation5 + $0x8] sm:$0xf]
        %v280 = vld [vmem:[#allocation5 + $0xc] sm:$0xf]
        %v281 = vld [vmem:[%s2] sm:$0x1]
        %v283 = vperm.slane %v281, 0
        %v289 = vunpack.c.l.b16 %v277
        %v290 = vunpack.c.l.b16 %v278
        %v291 = vunpack.c.l.b16 %v279
        %v292 = vunpack.c.l.b16 %v280
        %v293 = vpack.c.b16 %v290, %v289
        %v294 = vpack.c.b16 %v292, %v291
        %vm297 = vcmask 261120
        %v299 = vsel %vm297, %v276, 0
        %301 = vmatpush.bf16.msra.mxu0 0
        %302 = vmatpush.bf16.msra.mxu0 0
        %303 = vmatpush.bf16.msra.mxu0 0
        %304 = vmatpush.bf16.msra.mxu0 0
        %305 = vmatpush.bf16.msra.mxu0 0
        %306 = vmatpush.bf16.msra.mxu0 0
        %307 = vmatpush.bf16.msra.mxu0 %v294
        %308 = vmatpush.bf16.msra.mxu0 %v293
        %309 = vmatmul.bf16.gmra.mxu0 %v299
        %v310 = vpop.f32.mrf.mxu0
        %v311 = vadd.f32 %v283, %v310
        %v312 = vpop.f32.mrf.mxu0
        %313 = vdwg.mxu0
        %v314 = vmul.f32 %v311, 0.35355338
        %316 = vrot.lane.b32.xlu0 %v314, 120
        %v317 = vpop.permute.xlu0 %316
        %319 = vrot.lane.b32.xlu0 %v314, 112
        %v320 = vpop.permute.xlu0 %319
        %322 = vrot.lane.b32.xlu0 %v314, 104
        %v323 = vpop.permute.xlu0 %322
        %v325 = vrot.slane %v320, 4
        %vm326 = vcmask 1047556
        %v327 = vsel %vm326, %v325, %v314
        %v328 = vrot.slane %v314, 4
        %v329 = vsel %vm326, %v320, %v328
        %v331 = vunpack.c.l.s4 1983009808
        %v332 = vunpack.c.0.s8 %v331
        %v333 = vperm.slane %v327, %v332
        %v335 = vunpack.c.l.s4 1983009808
        %v336 = vunpack.c.0.s8 %v335
        %v337 = vperm.slane %v329, %v336
        %v338 = vrot.slane %v323, 4
        %v339 = vsel %vm326, %v338, %v317
        %v340 = vrot.slane %v317, 4
        %v341 = vsel %vm326, %v323, %v340
        %v343 = vunpack.c.l.s4 1983009808
        %v344 = vunpack.c.0.s8 %v343
        %v345 = vperm.slane %v339, %v344
        %v347 = vunpack.c.l.s4 1983009808
        %v348 = vunpack.c.0.s8 %v347
        %v349 = vperm.slane %v341, %v348
        %v350 = vrot.slane %v345, 4
        %v351 = vsel %vm326, %v350, %v333
        %v352 = vrot.slane %v333, 4
        %v353 = vsel %vm326, %v345, %v352
        %v355 = vunpack.c.l.s4 1934713408
        %v356 = vunpack.c.0.s8 %v355
        %v357 = vperm.slane %v351, %v356
        %v359 = vunpack.c.l.s4 1934713408
        %v360 = vunpack.c.0.s8 %v359
        %v361 = vperm.slane %v353, %v360
        %v362 = vrot.slane %v349, 4
        %v363 = vsel %vm326, %v362, %v337
        %v364 = vrot.slane %v337, 4
        %v365 = vsel %vm326, %v349, %v364
        %v367 = vunpack.c.l.s4 1934713408
        %v368 = vunpack.c.0.s8 %v367
        %v369 = vperm.slane %v363, %v368
        %v371 = vunpack.c.l.s4 1934713408
        %v372 = vunpack.c.0.s8 %v371
        %v373 = vperm.slane %v365, %v372
        %v374 = vrot.slane %v357, 4
        %v375 = vsel %vm326, 0.0, %v374
        %v376 = vrot.slane %v361, 4
        %v377 = vsel %vm326, 0.0, %v376
        %v378 = vrot.slane %v369, 4
        %v379 = vsel %vm326, 0.0, %v378
        %v380 = vrot.slane %v373, 4
        %v381 = vsel %vm326, 0.0, %v380
        %383 = vrot.lane.b32.xlu0 %v311, 120
        %v384 = vpop.permute.xlu0 %383
        %385 = vrot.lane.b32.xlu0 %v311, 112
        %v386 = vpop.permute.xlu0 %385
        %387 = vrot.lane.b32.xlu0 %v311, 104
        %v388 = vpop.permute.xlu0 %387
        %389 = vrot.lane.b32.xlu0 %v311, 96
        %v390 = vpop.permute.xlu0 %389
        %391 = vrot.lane.b32.xlu0 %v384, 96
        %v392 = vpop.permute.xlu0 %391
        %393 = vrot.lane.b32.xlu0 %v386, 96
        %v394 = vpop.permute.xlu0 %393
        %395 = vrot.lane.b32.xlu0 %v388, 96
        %v396 = vpop.permute.xlu0 %395
        %v401 = vrot.slane %v394, 4
        %v402 = vsel %vm326, %v401, %v390
        %v403 = vrot.slane %v390, 4
        %v404 = vsel %vm326, %v394, %v403
        %v406 = vunpack.c.l.s4 1983009808
        %v407 = vunpack.c.0.s8 %v406
        %v408 = vperm.slane %v402, %v407
        %v410 = vunpack.c.l.s4 1983009808
        %v411 = vunpack.c.0.s8 %v410
        %v412 = vperm.slane %v404, %v411
        %v413 = vrot.slane %v396, 4
        %v414 = vsel %vm326, %v413, %v392
        %v415 = vrot.slane %v392, 4
        %v416 = vsel %vm326, %v396, %v415
        %v418 = vunpack.c.l.s4 1983009808
        %v419 = vunpack.c.0.s8 %v418
        %v420 = vperm.slane %v414, %v419
        %v422 = vunpack.c.l.s4 1983009808
        %v423 = vunpack.c.0.s8 %v422
        %v424 = vperm.slane %v416, %v423
        %v425 = vrot.slane %v420, 4
        %v426 = vsel %vm326, %v425, %v408
        %v427 = vrot.slane %v408, 4
        %v428 = vsel %vm326, %v420, %v427
        %v430 = vunpack.c.l.s4 1934713408
        %v431 = vunpack.c.0.s8 %v430
        %v432 = vperm.slane %v426, %v431
        %v434 = vunpack.c.l.s4 1934713408
        %v435 = vunpack.c.0.s8 %v434
        %v436 = vperm.slane %v428, %v435
        %v437 = vrot.slane %v424, 4
        %v438 = vsel %vm326, %v437, %v412
        %v439 = vrot.slane %v412, 4
        %v440 = vsel %vm326, %v424, %v439
        %v442 = vunpack.c.l.s4 1934713408
        %v443 = vunpack.c.0.s8 %v442
        %v444 = vperm.slane %v438, %v443
        %v446 = vunpack.c.l.s4 1934713408
        %v447 = vunpack.c.0.s8 %v446
        %v448 = vperm.slane %v440, %v447
        %v449 = vrot.slane %v432, 4
        %v450 = vsel %vm326, 0.0, %v449
        %v451 = vrot.slane %v436, 4
        %v452 = vsel %vm326, 0.0, %v451
        %v453 = vrot.slane %v444, 4
        %v454 = vsel %vm326, 0.0, %v453
        %v455 = vrot.slane %v448, 4
        %v456 = vsel %vm326, 0.0, %v455
        %457 = vrot.lane.b32.xlu0 %v311, 64
        %v458 = vpop.permute.xlu0 %457
        %459 = vrot.lane.b32.xlu0 %v384, 64
        %v460 = vpop.permute.xlu0 %459
        %461 = vrot.lane.b32.xlu0 %v386, 64
        %v462 = vpop.permute.xlu0 %461
        %463 = vrot.lane.b32.xlu0 %v388, 64
        %v464 = vpop.permute.xlu0 %463
        %v469 = vrot.slane %v462, 4
        %v470 = vsel %vm326, %v469, %v458
        %v471 = vrot.slane %v458, 4
        %v472 = vsel %vm326, %v462, %v471
        %v474 = vunpack.c.l.s4 1983009808
        %v475 = vunpack.c.0.s8 %v474
        %v476 = vperm.slane %v470, %v475
        %v478 = vunpack.c.l.s4 1983009808
        %v479 = vunpack.c.0.s8 %v478
        %v480 = vperm.slane %v472, %v479
        %v481 = vrot.slane %v464, 4
        %v482 = vsel %vm326, %v481, %v460
        %v483 = vrot.slane %v460, 4
        %v484 = vsel %vm326, %v464, %v483
        %v486 = vunpack.c.l.s4 1983009808
        %v487 = vunpack.c.0.s8 %v486
        %v488 = vperm.slane %v482, %v487
        %v490 = vunpack.c.l.s4 1983009808
        %v491 = vunpack.c.0.s8 %v490
        %v492 = vperm.slane %v484, %v491
        %v493 = vrot.slane %v488, 4
        %v494 = vsel %vm326, %v493, %v476
        %v495 = vrot.slane %v476, 4
        %v496 = vsel %vm326, %v488, %v495
        %v498 = vunpack.c.l.s4 1934713408
        %v499 = vunpack.c.0.s8 %v498
        %v500 = vperm.slane %v494, %v499
        %v502 = vunpack.c.l.s4 1934713408
        %v503 = vunpack.c.0.s8 %v502
        %v504 = vperm.slane %v496, %v503
        %v505 = vrot.slane %v492, 4
        %v506 = vsel %vm326, %v505, %v480
        %v507 = vrot.slane %v480, 4
        %v508 = vsel %vm326, %v492, %v507
        %v510 = vunpack.c.l.s4 1934713408
        %v511 = vunpack.c.0.s8 %v510
        %v512 = vperm.slane %v506, %v511
        %v514 = vunpack.c.l.s4 1934713408
        %v515 = vunpack.c.0.s8 %v514
        %v516 = vperm.slane %v508, %v515
        %v517 = vrot.slane %v500, 4
        %v518 = vsel %vm326, 0.0, %v517
        %v519 = vrot.slane %v504, 4
        %v520 = vsel %vm326, 0.0, %v519
        %v521 = vrot.slane %v512, 4
        %v522 = vsel %vm326, 0.0, %v521
        %v523 = vrot.slane %v516, 4
        %v524 = vsel %vm326, 0.0, %v523
        %v525 = vpack.c.bf16 %v357, %v357
        %v526 = vpack.c.bf16 %v375, %v375
        %v527 = vpack.c.bf16 %v361, %v361
        %v528 = vpack.c.bf16 %v377, %v377
        %v529 = vpack.c.bf16 %v369, %v369
        %v530 = vpack.c.bf16 %v379, %v379
        %v531 = vpack.c.bf16 %v373, %v373
        %v532 = vpack.c.bf16 %v381, %v381
        %v533 = vpack.c.bf16 %v432, %v432
        %v534 = vpack.c.bf16 %v450, %v450
        %v535 = vpack.c.bf16 %v436, %v436
        %v536 = vpack.c.bf16 %v452, %v452
        %v537 = vpack.c.bf16 %v444, %v444
        %v538 = vpack.c.bf16 %v454, %v454
        %v539 = vpack.c.bf16 %v448, %v448
        %v540 = vpack.c.bf16 %v456, %v456
        %v541 = vrot.slane %v529, 4
        %vm542 = vcmask 1047556
        %v543 = vsel %vm542, %v541, %v525
        %v545 = vunpack.c.l.s4 1983009808
        %v546 = vunpack.c.0.s8 %v545
        %v547 = vperm.slane %v543, %v546
        %v548 = vrot.slane %v531, 4
        %v549 = vsel %vm542, %v548, %v527
        %v551 = vunpack.c.l.s4 1983009808
        %v552 = vunpack.c.0.s8 %v551
        %v553 = vperm.slane %v549, %v552
        %v554 = vrot.slane %v553, 4
        %v555 = vsel %vm542, %v554, %v547
        %v557 = vunpack.c.l.s4 1934713408
        %v558 = vunpack.c.0.s8 %v557
        %v559 = vperm.slane %v555, %v558
        %v560 = vrot.slane %v559, 4
        %v561 = vsel %vm542, 0, %v560
        %v562 = vrot.slane %v530, 4
        %v563 = vsel %vm542, %v562, %v526
        %v565 = vunpack.c.l.s4 1983009808
        %v566 = vunpack.c.0.s8 %v565
        %v567 = vperm.slane %v563, %v566
        %v568 = vrot.slane %v532, 4
        %v569 = vsel %vm542, %v568, %v528
        %v571 = vunpack.c.l.s4 1983009808
        %v572 = vunpack.c.0.s8 %v571
        %v573 = vperm.slane %v569, %v572
        %v574 = vrot.slane %v573, 4
        %v575 = vsel %vm542, %v574, %v567
        %v577 = vunpack.c.l.s4 1934713408
        %v578 = vunpack.c.0.s8 %v577
        %v579 = vperm.slane %v575, %v578
        %v580 = vrot.slane %v579, 4
        %v581 = vsel %vm542, 0, %v580
        %v584 = vpack.i.b16 %v579, %v559
        %v585 = vshrl.u32 %v559, 16
        %v586 = vshrl.u32 %v579, 16
        %v587 = vpack.i.b16 %v586, %v585
        %v590 = vpack.i.b16 %v581, %v561
        %v591 = vshrl.u32 %v561, 16
        %v592 = vshrl.u32 %v581, 16
        %v593 = vpack.i.b16 %v592, %v591
        %594 = vxpose.xlu0.c.b16.start [1/8] %v533, 128
        %595 = vxpose.xlu0.c.b16.cont [2/8] 0, 128
        %596 = vxpose.xlu0.c.b16.cont [3/8] 0, 128
        %597 = vxpose.xlu0.c.b16.cont [4/8] 0, 128
        %598 = vxpose.xlu0.c.b16.cont [5/8] 0, 128
        %599 = vxpose.xlu0.c.b16.cont [6/8] 0, 128
        %600 = vxpose.xlu0.c.b16.cont [7/8] 0, 128
        %601 = vxpose.xlu0.c.b16.end [8/8] 0, 128
        %v602 = vpop.trf.xlu0
        %v603 = vpop.trf.xlu0
        %v604 = vpop.trf.xlu0
        %v605 = vpop.trf.xlu0
        %v606 = vpop.trf.xlu0
        %v607 = vpop.trf.xlu0
        %v608 = vpop.trf.xlu0
        %v609 = vpop.trf.xlu0
        %610 = vxpose.xlu0.c.b16.start [1/8] %v534, 128
        %611 = vxpose.xlu0.c.b16.cont [2/8] 0, 128
        %612 = vxpose.xlu0.c.b16.cont [3/8] 0, 128
        %613 = vxpose.xlu0.c.b16.cont [4/8] 0, 128
        %614 = vxpose.xlu0.c.b16.cont [5/8] 0, 128
        %615 = vxpose.xlu0.c.b16.cont [6/8] 0, 128
        %616 = vxpose.xlu0.c.b16.cont [7/8] 0, 128
        %617 = vxpose.xlu0.c.b16.end [8/8] 0, 128
        %v618 = vpop.trf.xlu0
        %v619 = vpop.trf.xlu0
        %v620 = vpop.trf.xlu0
        %v621 = vpop.trf.xlu0
        %v622 = vpop.trf.xlu0
        %v623 = vpop.trf.xlu0
        %v624 = vpop.trf.xlu0
        %v625 = vpop.trf.xlu0
        %626 = vxpose.xlu0.c.b16.start [1/8] %v535, 128
        %627 = vxpose.xlu0.c.b16.cont [2/8] 0, 128
        %628 = vxpose.xlu0.c.b16.cont [3/8] 0, 128
        %629 = vxpose.xlu0.c.b16.cont [4/8] 0, 128
        %630 = vxpose.xlu0.c.b16.cont [5/8] 0, 128
        %631 = vxpose.xlu0.c.b16.cont [6/8] 0, 128
        %632 = vxpose.xlu0.c.b16.cont [7/8] 0, 128
        %633 = vxpose.xlu0.c.b16.end [8/8] 0, 128
        %v634 = vpop.trf.xlu0
        %v635 = vpop.trf.xlu0
        %v636 = vpop.trf.xlu0
        %v637 = vpop.trf.xlu0
        %v638 = vpop.trf.xlu0
        %v639 = vpop.trf.xlu0
        %v640 = vpop.trf.xlu0
        %v641 = vpop.trf.xlu0
        %642 = vxpose.xlu0.c.b16.start [1/8] %v536, 128
        %643 = vxpose.xlu0.c.b16.cont [2/8] 0, 128
        %644 = vxpose.xlu0.c.b16.cont [3/8] 0, 128
        %645 = vxpose.xlu0.c.b16.cont [4/8] 0, 128
        %646 = vxpose.xlu0.c.b16.cont [5/8] 0, 128
        %647 = vxpose.xlu0.c.b16.cont [6/8] 0, 128
        %648 = vxpose.xlu0.c.b16.cont [7/8] 0, 128
        %649 = vxpose.xlu0.c.b16.end [8/8] 0, 128
        %v650 = vpop.trf.xlu0
        %v651 = vpop.trf.xlu0
        %v652 = vpop.trf.xlu0
        %v653 = vpop.trf.xlu0
        %v654 = vpop.trf.xlu0
        %v655 = vpop.trf.xlu0
        %v656 = vpop.trf.xlu0
        %v657 = vpop.trf.xlu0
        %658 = vxpose.xlu0.c.b16.start [1/8] %v537, 128
        %659 = vxpose.xlu0.c.b16.cont [2/8] 0, 128
        %660 = vxpose.xlu0.c.b16.cont [3/8] 0, 128
        %661 = vxpose.xlu0.c.b16.cont [4/8] 0, 128
        %662 = vxpose.xlu0.c.b16.cont [5/8] 0, 128
        %663 = vxpose.xlu0.c.b16.cont [6/8] 0, 128
        %664 = vxpose.xlu0.c.b16.cont [7/8] 0, 128
        %665 = vxpose.xlu0.c.b16.end [8/8] 0, 128
        %v666 = vpop.trf.xlu0
        %v667 = vpop.trf.xlu0
        %v668 = vpop.trf.xlu0
        %v669 = vpop.trf.xlu0
        %v670 = vpop.trf.xlu0
        %v671 = vpop.trf.xlu0
        %v672 = vpop.trf.xlu0
        %v673 = vpop.trf.xlu0
        %674 = vxpose.xlu0.c.b16.start [1/8] %v538, 128
        %675 = vxpose.xlu0.c.b16.cont [2/8] 0, 128
        %676 = vxpose.xlu0.c.b16.cont [3/8] 0, 128
        %677 = vxpose.xlu0.c.b16.cont [4/8] 0, 128
        %678 = vxpose.xlu0.c.b16.cont [5/8] 0, 128
        %679 = vxpose.xlu0.c.b16.cont [6/8] 0, 128
        %680 = vxpose.xlu0.c.b16.cont [7/8] 0, 128
        %681 = vxpose.xlu0.c.b16.end [8/8] 0, 128
        %v682 = vpop.trf.xlu0
        %v683 = vpop.trf.xlu0
        %v684 = vpop.trf.xlu0
        %v685 = vpop.trf.xlu0
        %v686 = vpop.trf.xlu0
        %v687 = vpop.trf.xlu0
        %v688 = vpop.trf.xlu0
        %v689 = vpop.trf.xlu0
        %690 = vxpose.xlu0.c.b16.start [1/8] %v539, 128
        %691 = vxpose.xlu0.c.b16.cont [2/8] 0, 128
        %692 = vxpose.xlu0.c.b16.cont [3/8] 0, 128
        %693 = vxpose.xlu0.c.b16.cont [4/8] 0, 128
        %694 = vxpose.xlu0.c.b16.cont [5/8] 0, 128
        %695 = vxpose.xlu0.c.b16.cont [6/8] 0, 128
        %696 = vxpose.xlu0.c.b16.cont [7/8] 0, 128
        %697 = vxpose.xlu0.c.b16.end [8/8] 0, 128
        %v698 = vpop.trf.xlu0
        %v699 = vpop.trf.xlu0
        %v700 = vpop.trf.xlu0
        %v701 = vpop.trf.xlu0
        %v702 = vpop.trf.xlu0
        %v703 = vpop.trf.xlu0
        %v704 = vpop.trf.xlu0
        %v705 = vpop.trf.xlu0
        %706 = vxpose.xlu0.c.b16.start [1/8] %v540, 128
        %707 = vxpose.xlu0.c.b16.cont [2/8] 0, 128
        %708 = vxpose.xlu0.c.b16.cont [3/8] 0, 128
        %709 = vxpose.xlu0.c.b16.cont [4/8] 0, 128
        %710 = vxpose.xlu0.c.b16.cont [5/8] 0, 128
        %711 = vxpose.xlu0.c.b16.cont [6/8] 0, 128
        %712 = vxpose.xlu0.c.b16.cont [7/8] 0, 128
        %713 = vxpose.xlu0.c.b16.end [8/8] 0, 128
        %v714 = vpop.trf.xlu0
        %v715 = vpop.trf.xlu0
        %v716 = vpop.trf.xlu0
        %v717 = vpop.trf.xlu0
        %v718 = vpop.trf.xlu0
        %v719 = vpop.trf.xlu0
        %v720 = vpop.trf.xlu0
        %v721 = vpop.trf.xlu0
        %v722 = vrot.slane %v666, 4
        %v723 = vsel %vm542, %v722, %v602
        %v725 = vunpack.c.l.s4 1983009808
        %v726 = vunpack.c.0.s8 %v725
        %v727 = vperm.slane %v723, %v726
        %v728 = vrot.slane %v698, 4
        %v729 = vsel %vm542, %v728, %v634
        %v731 = vunpack.c.l.s4 1983009808
        %v732 = vunpack.c.0.s8 %v731
        %v733 = vperm.slane %v729, %v732
        %v734 = vrot.slane %v733, 4
        %v735 = vsel %vm542, %v734, %v727
        %v736 = vrot.slane %v727, 4
        %v737 = vsel %vm542, %v733, %v736
        %v739 = vunpack.c.l.s4 1934713408
        %v740 = vunpack.c.0.s8 %v739
        %v741 = vperm.slane %v735, %v740
        %v743 = vunpack.c.l.s4 1934713408
        %v744 = vunpack.c.0.s8 %v743
        %v745 = vperm.slane %v737, %v744
        %v746 = vrot.slane %v741, 4
        %v747 = vsel %vm542, 0, %v746
        %v748 = vrot.slane %v745, 4
        %v749 = vsel %vm542, 0, %v748
        %v750 = vrot.slane %v682, 4
        %v751 = vsel %vm542, %v750, %v618
        %v753 = vunpack.c.l.s4 1983009808
        %v754 = vunpack.c.0.s8 %v753
        %v755 = vperm.slane %v751, %v754
        %v756 = vrot.slane %v714, 4
        %v757 = vsel %vm542, %v756, %v650
        %v759 = vunpack.c.l.s4 1983009808
        %v760 = vunpack.c.0.s8 %v759
        %v761 = vperm.slane %v757, %v760
        %v762 = vrot.slane %v761, 4
        %v763 = vsel %vm542, %v762, %v755
        %v764 = vrot.slane %v755, 4
        %v765 = vsel %vm542, %v761, %v764
        %v767 = vunpack.c.l.s4 1934713408
        %v768 = vunpack.c.0.s8 %v767
        %v769 = vperm.slane %v763, %v768
        %v771 = vunpack.c.l.s4 1934713408
        %v772 = vunpack.c.0.s8 %v771
        %v773 = vperm.slane %v765, %v772
        %v774 = vrot.slane %v769, 4
        %v775 = vsel %vm542, 0, %v774
        %v776 = vrot.slane %v773, 4
        %v777 = vsel %vm542, 0, %v776
        %v780 = vpack.i.b16 %v769, %v741
        %v782 = vshrl.u32 %v741, 16
        %v783 = vshrl.u32 %v769, 16
        %v784 = vpack.i.b16 %v783, %v782
        %v788 = vpack.i.b16 %v775, %v747
        %v790 = vshrl.u32 %v747, 16
        %v791 = vshrl.u32 %v775, 16
        %v792 = vpack.i.b16 %v791, %v790
        %v796 = vpack.i.b16 %v773, %v745
        %v798 = vshrl.u32 %v745, 16
        %v799 = vshrl.u32 %v773, 16
        %v800 = vpack.i.b16 %v799, %v798
        %v804 = vpack.i.b16 %v777, %v749
        %v806 = vshrl.u32 %v749, 16
        %v807 = vshrl.u32 %v777, 16
        %v808 = vpack.i.b16 %v807, %v806
        %810 = vxpose.xlu0.c.b16.start [1/8] %v780, 128
        %811 = vxpose.xlu0.c.b16.cont [2/8] 0, 128
        %812 = vxpose.xlu0.c.b16.cont [3/8] 0, 128
        %813 = vxpose.xlu0.c.b16.cont [4/8] 0, 128
        %814 = vxpose.xlu0.c.b16.cont [5/8] 0, 128
        %815 = vxpose.xlu0.c.b16.cont [6/8] 0, 128
        %816 = vxpose.xlu0.c.b16.cont [7/8] 0, 128
        %817 = vxpose.xlu0.c.b16.end [8/8] 0, 128
        %v818 = vpop.trf.xlu0
        %v819 = vpop.trf.xlu0
        %v820 = vpop.trf.xlu0
        %v821 = vpop.trf.xlu0
        %v822 = vpop.trf.xlu0
        %v823 = vpop.trf.xlu0
        %v824 = vpop.trf.xlu0
        %v825 = vpop.trf.xlu0
        %826 = vxpose.xlu0.c.b16.start [1/8] %v784, 128
        %827 = vxpose.xlu0.c.b16.cont [2/8] 0, 128
        %828 = vxpose.xlu0.c.b16.cont [3/8] 0, 128
        %829 = vxpose.xlu0.c.b16.cont [4/8] 0, 128
        %830 = vxpose.xlu0.c.b16.cont [5/8] 0, 128
        %831 = vxpose.xlu0.c.b16.cont [6/8] 0, 128
        %832 = vxpose.xlu0.c.b16.cont [7/8] 0, 128
        %833 = vxpose.xlu0.c.b16.end [8/8] 0, 128
        %v834 = vpop.trf.xlu0
        %v835 = vpop.trf.xlu0
        %v836 = vpop.trf.xlu0
        %v837 = vpop.trf.xlu0
        %v838 = vpop.trf.xlu0
        %v839 = vpop.trf.xlu0
        %v840 = vpop.trf.xlu0
        %v841 = vpop.trf.xlu0
        %842 = vxpose.xlu0.c.b16.start [1/8] %v788, 128
        %843 = vxpose.xlu0.c.b16.cont [2/8] 0, 128
        %844 = vxpose.xlu0.c.b16.cont [3/8] 0, 128
        %845 = vxpose.xlu0.c.b16.cont [4/8] 0, 128
        %846 = vxpose.xlu0.c.b16.cont [5/8] 0, 128
        %847 = vxpose.xlu0.c.b16.cont [6/8] 0, 128
        %848 = vxpose.xlu0.c.b16.cont [7/8] 0, 128
        %849 = vxpose.xlu0.c.b16.end [8/8] 0, 128
        %v850 = vpop.trf.xlu0
        %v851 = vpop.trf.xlu0
        %v852 = vpop.trf.xlu0
        %v853 = vpop.trf.xlu0
        %v854 = vpop.trf.xlu0
        %v855 = vpop.trf.xlu0
        %v856 = vpop.trf.xlu0
        %v857 = vpop.trf.xlu0
        %858 = vxpose.xlu0.c.b16.start [1/8] %v792, 128
        %859 = vxpose.xlu0.c.b16.cont [2/8] 0, 128
        %860 = vxpose.xlu0.c.b16.cont [3/8] 0, 128
        %861 = vxpose.xlu0.c.b16.cont [4/8] 0, 128
        %862 = vxpose.xlu0.c.b16.cont [5/8] 0, 128
        %863 = vxpose.xlu0.c.b16.cont [6/8] 0, 128
        %864 = vxpose.xlu0.c.b16.cont [7/8] 0, 128
        %865 = vxpose.xlu0.c.b16.end [8/8] 0, 128
        %v866 = vpop.trf.xlu0
        %v867 = vpop.trf.xlu0
        %v868 = vpop.trf.xlu0
        %v869 = vpop.trf.xlu0
        %v870 = vpop.trf.xlu0
        %v871 = vpop.trf.xlu0
        %v872 = vpop.trf.xlu0
        %v873 = vpop.trf.xlu0
        %874 = vxpose.xlu0.c.b16.start [1/8] %v796, 128
        %875 = vxpose.xlu0.c.b16.cont [2/8] 0, 128
        %876 = vxpose.xlu0.c.b16.cont [3/8] 0, 128
        %877 = vxpose.xlu0.c.b16.cont [4/8] 0, 128
        %878 = vxpose.xlu0.c.b16.cont [5/8] 0, 128
        %879 = vxpose.xlu0.c.b16.cont [6/8] 0, 128
        %880 = vxpose.xlu0.c.b16.cont [7/8] 0, 128
        %881 = vxpose.xlu0.c.b16.end [8/8] 0, 128
        %v882 = vpop.trf.xlu0
        %v883 = vpop.trf.xlu0
        %v884 = vpop.trf.xlu0
        %v885 = vpop.trf.xlu0
        %v886 = vpop.trf.xlu0
        %v887 = vpop.trf.xlu0
        %v888 = vpop.trf.xlu0
        %v889 = vpop.trf.xlu0
        %890 = vxpose.xlu0.c.b16.start [1/8] %v800, 128
        %891 = vxpose.xlu0.c.b16.cont [2/8] 0, 128
        %892 = vxpose.xlu0.c.b16.cont [3/8] 0, 128
        %893 = vxpose.xlu0.c.b16.cont [4/8] 0, 128
        %894 = vxpose.xlu0.c.b16.cont [5/8] 0, 128
        %895 = vxpose.xlu0.c.b16.cont [6/8] 0, 128
        %896 = vxpose.xlu0.c.b16.cont [7/8] 0, 128
        %897 = vxpose.xlu0.c.b16.end [8/8] 0, 128
        %v898 = vpop.trf.xlu0
        %v899 = vpop.trf.xlu0
        %v900 = vpop.trf.xlu0
        %v901 = vpop.trf.xlu0
        %v902 = vpop.trf.xlu0
        %v903 = vpop.trf.xlu0
        %v904 = vpop.trf.xlu0
        %v905 = vpop.trf.xlu0
        %906 = vxpose.xlu0.c.b16.start [1/8] %v804, 128
        %907 = vxpose.xlu0.c.b16.cont [2/8] 0, 128
        %908 = vxpose.xlu0.c.b16.cont [3/8] 0, 128
        %909 = vxpose.xlu0.c.b16.cont [4/8] 0, 128
        %910 = vxpose.xlu0.c.b16.cont [5/8] 0, 128
        %911 = vxpose.xlu0.c.b16.cont [6/8] 0, 128
        %912 = vxpose.xlu0.c.b16.cont [7/8] 0, 128
        %913 = vxpose.xlu0.c.b16.end [8/8] 0, 128
        %v914 = vpop.trf.xlu0
        %v915 = vpop.trf.xlu0
        %v916 = vpop.trf.xlu0
        %v917 = vpop.trf.xlu0
        %v918 = vpop.trf.xlu0
        %v919 = vpop.trf.xlu0
        %v920 = vpop.trf.xlu0
        %v921 = vpop.trf.xlu0
        %922 = vxpose.xlu0.c.b16.start [1/8] %v808, 128
        %923 = vxpose.xlu0.c.b16.cont [2/8] 0, 128
        %924 = vxpose.xlu0.c.b16.cont [3/8] 0, 128
        %925 = vxpose.xlu0.c.b16.cont [4/8] 0, 128
        %926 = vxpose.xlu0.c.b16.cont [5/8] 0, 128
        %927 = vxpose.xlu0.c.b16.cont [6/8] 0, 128
        %928 = vxpose.xlu0.c.b16.cont [7/8] 0, 128
        %929 = vxpose.xlu0.c.b16.end [8/8] 0, 128
        %v930 = vpop.trf.xlu0
        %v931 = vpop.trf.xlu0
        %v932 = vpop.trf.xlu0
        %v933 = vpop.trf.xlu0
        %v934 = vpop.trf.xlu0
        %v935 = vpop.trf.xlu0
        %v936 = vpop.trf.xlu0
        %v937 = vpop.trf.xlu0
        %v938 = vrot.slane %v882, 4
        %v939 = vsel %vm542, %v938, %v818
        %v941 = vunpack.c.l.s4 1983009808
        %v942 = vunpack.c.0.s8 %v941
        %v943 = vperm.slane %v939, %v942
        %v944 = vrot.slane %v914, 4
        %v945 = vsel %vm542, %v944, %v850
        %v947 = vunpack.c.l.s4 1983009808
        %v948 = vunpack.c.0.s8 %v947
        %v949 = vperm.slane %v945, %v948
        %v950 = vrot.slane %v949, 4
        %v951 = vsel %vm542, %v950, %v943
        %v953 = vunpack.c.l.s4 1934713408
        %v954 = vunpack.c.0.s8 %v953
        %v955 = vperm.slane %v951, %v954
        %v956 = vrot.slane %v955, 4
        %v957 = vsel %vm542, 0, %v956
        %v958 = vrot.slane %v898, 4
        %v959 = vsel %vm542, %v958, %v834
        %v961 = vunpack.c.l.s4 1983009808
        %v962 = vunpack.c.0.s8 %v961
        %v963 = vperm.slane %v959, %v962
        %v964 = vrot.slane %v930, 4
        %v965 = vsel %vm542, %v964, %v866
        %v967 = vunpack.c.l.s4 1983009808
        %v968 = vunpack.c.0.s8 %v967
        %v969 = vperm.slane %v965, %v968
        %v970 = vrot.slane %v969, 4
        %v971 = vsel %vm542, %v970, %v963
        %v973 = vunpack.c.l.s4 1934713408
        %v974 = vunpack.c.0.s8 %v973
        %v975 = vperm.slane %v971, %v974
        %v976 = vrot.slane %v975, 4
        %v977 = vsel %vm542, 0, %v976
        %v980 = vpack.i.b16 %v975, %v955
        %v981 = vshrl.u32 %v955, 16
        %v982 = vshrl.u32 %v975, 16
        %v983 = vpack.i.b16 %v982, %v981
        %v986 = vpack.i.b16 %v977, %v957
        %v987 = vshrl.u32 %v957, 16
        %v988 = vshrl.u32 %v977, 16
        %v989 = vpack.i.b16 %v988, %v987
        %vm990 = vcmask 64512
        %v992 = vsel %vm990, %v584, 0
        %vm994 = vcmask 1043456
        %v996 = vsel %vm994, %v980, 0
        %998 = vmatpush.bf16.msra.mxu0 0
        %999 = vmatpush.bf16.msra.mxu0 0
        %1000 = vmatpush.bf16.msra.mxu0 0
        %1001 = vmatpush.bf16.msra.mxu0 0
        %1002 = vmatpush.bf16.msra.mxu0 0
        %1003 = vmatpush.bf16.msra.mxu0 0
        %1004 = vmatpush.bf16.msra.mxu0 0
        %1005 = vmatpush.bf16.msra.mxu0 %v996
        %1006 = vmatmul.bf16.gmra.mxu0 %v992
        %v1007 = vpop.f32.mrf.mxu0
        %v1008 = vadd.f32 0.0, %v1007
        %v1009 = vpop.f32.mrf.mxu0
        %1010 = vdwg.mxu0
        %v1012 = vsel %vm990, %v587, 0
        %v1015 = vsel %vm994, %v983, 0
        %1017 = vmatpush.bf16.msra.mxu0 0
        %1018 = vmatpush.bf16.msra.mxu0 0
        %1019 = vmatpush.bf16.msra.mxu0 0
        %1020 = vmatpush.bf16.msra.mxu0 0
        %1021 = vmatpush.bf16.msra.mxu0 0
        %1022 = vmatpush.bf16.msra.mxu0 0
        %1023 = vmatpush.bf16.msra.mxu0 0
        %1024 = vmatpush.bf16.msra.mxu0 %v1015
        %1025 = vmatmul.bf16.gmra.mxu0 %v1012
        %v1026 = vpop.f32.mrf.mxu0
        %v1027 = vadd.f32 0.0, %v1026
        %v1028 = vpop.f32.mrf.mxu0
        %1029 = vdwg.mxu0
        %v1031 = vsel %vm990, %v590, 0
        %v1034 = vsel %vm994, %v986, 0
        %1036 = vmatpush.bf16.msra.mxu0 0
        %1037 = vmatpush.bf16.msra.mxu0 0
        %1038 = vmatpush.bf16.msra.mxu0 0
        %1039 = vmatpush.bf16.msra.mxu0 0
        %1040 = vmatpush.bf16.msra.mxu0 0
        %1041 = vmatpush.bf16.msra.mxu0 0
        %1042 = vmatpush.bf16.msra.mxu0 0
        %1043 = vmatpush.bf16.msra.mxu0 %v1034
        %1044 = vmatmul.bf16.gmra.mxu0 %v1031
        %v1045 = vpop.f32.mrf.mxu0
        %v1046 = vadd.f32 0.0, %v1045
        %v1047 = vpop.f32.mrf.mxu0
        %1048 = vdwg.mxu0
        %v1050 = vsel %vm990, %v593, 0
        %v1053 = vsel %vm994, %v989, 0
        %1055 = vmatpush.bf16.msra.mxu0 0
        %1056 = vmatpush.bf16.msra.mxu0 0
        %1057 = vmatpush.bf16.msra.mxu0 0
        %1058 = vmatpush.bf16.msra.mxu0 0
        %1059 = vmatpush.bf16.msra.mxu0 0
        %1060 = vmatpush.bf16.msra.mxu0 0
        %1061 = vmatpush.bf16.msra.mxu0 0
        %1062 = vmatpush.bf16.msra.mxu0 %v1053
        %1063 = vmatmul.bf16.gmra.mxu0 %v1050
        %v1064 = vpop.f32.mrf.mxu0
        %v1065 = vadd.f32 0.0, %v1064
        %v1066 = vpop.f32.mrf.mxu0
        %1067 = vdwg.mxu0
        %v1068 = vlaneseq
        %v1069 = vshrl.u32 %v1068, 7
        %v1070 = vlaneseq
        %v1071 = vand.u32 %v1070, 127
        %vm1072 = vcmp.le.s32.totalorder %v1071, %v1069
        %v1073 = vsel %vm1072, 1, 0
        %vm1074 = vcmp.eq.s32.totalorder %v1073, 1
        %v1075 = vsel %vm1074, %v1008, -1e+30
        %v1076 = vsel %vm1074, %v1027, -1e+30
        %v1077 = vsel %vm1074, %v1046, -1e+30
        %v1078 = vsel %vm1074, %v1065, -1e+30
        %v1079 = vsel %vm990, %v1075, -inf
        %1080 = vmax.xlane.f32.xlu0 %v1079
        %v1081 = vpop.xlane.xlu0 %1080
        %v1082 = vsel %vm990, %v1076, -inf
        %1083 = vmax.xlane.f32.xlu0 %v1082
        %v1084 = vpop.xlane.xlu0 %1083
        %v1085 = vsel %vm990, %v1077, -inf
        %1086 = vmax.xlane.f32.xlu0 %v1085
        %v1087 = vpop.xlane.xlu0 %1086
        %v1088 = vsel %vm990, %v1078, -inf
        %1089 = vmax.xlane.f32.xlu0 %v1088
        %v1090 = vpop.xlane.xlu0 %1089
        %v1091 = vsub.f32 %v1075, %v1081
        %v1092 = vsub.f32 %v1076, %v1084
        %v1093 = vsub.f32 %v1077, %v1087
        %v1094 = vsub.f32 %v1078, %v1090
        %v1095 = vmul.f32 %v1091, 1.442695
        %v1096 = vpow.pop %v1095
        %v1097 = vmul.f32 %v1092, 1.442695
        %v1098 = vpow.pop %v1097
        %v1099 = vmul.f32 %v1093, 1.442695
        %v1100 = vpow.pop %v1099
        %v1101 = vmul.f32 %v1094, 1.442695
        %v1102 = vpow.pop %v1101
        %v1103 = vsel %vm990, %v1096, 0.0
        %1104 = vadd.xlane.f32.xlu0 %v1103
        %v1105 = vpop.xlane.xlu0 %1104
        %v1106 = vsel %vm990, %v1098, 0.0
        %1107 = vadd.xlane.f32.xlu0 %v1106
        %v1108 = vpop.xlane.xlu0 %1107
        %v1109 = vsel %vm990, %v1100, 0.0
        %1110 = vadd.xlane.f32.xlu0 %v1109
        %v1111 = vpop.xlane.xlu0 %1110
        %v1112 = vsel %vm990, %v1102, 0.0
        %1113 = vadd.xlane.f32.xlu0 %v1112
        %v1114 = vpop.xlane.xlu0 %1113
        %v1115 = vrcp.pop %v1105
        %v1116 = vrcp.pop %v1108
        %v1117 = vrcp.pop %v1111
        %v1118 = vrcp.pop %v1114
        %v1119 = vmul.f32 %v1096, %v1115
        %v1120 = vmul.f32 %v1098, %v1116
        %v1121 = vmul.f32 %v1100, %v1117
        %v1122 = vmul.f32 %v1102, %v1118
        %v1123 = vpack.c.bf16 %v1119, %v1119
        %v1124 = vpack.c.bf16 %v1120, %v1120
        %v1125 = vpack.c.bf16 %v1121, %v1121
        %v1126 = vpack.c.bf16 %v1122, %v1122
        %v1127 = vpack.c.bf16 %v500, %v500
        %v1128 = vpack.c.bf16 %v518, %v518
        %v1129 = vpack.c.bf16 %v504, %v504
        %v1130 = vpack.c.bf16 %v520, %v520
        %v1131 = vpack.c.bf16 %v512, %v512
        %v1132 = vpack.c.bf16 %v522, %v522
        %v1133 = vpack.c.bf16 %v516, %v516
        %v1134 = vpack.c.bf16 %v524, %v524
        %1135 = vxpose.xlu0.c.b16.start [1/8] %v1127, 128
        %1136 = vxpose.xlu0.c.b16.cont [2/8] 0, 128
        %1137 = vxpose.xlu0.c.b16.cont [3/8] 0, 128
        %1138 = vxpose.xlu0.c.b16.cont [4/8] 0, 128
        %1139 = vxpose.xlu0.c.b16.cont [5/8] 0, 128
        %1140 = vxpose.xlu0.c.b16.cont [6/8] 0, 128
        %1141 = vxpose.xlu0.c.b16.cont [7/8] 0, 128
        %1142 = vxpose.xlu0.c.b16.end [8/8] 0, 128
        %v1143 = vpop.trf.xlu0
        %v1144 = vpop.trf.xlu0
        %v1145 = vpop.trf.xlu0
        %v1146 = vpop.trf.xlu0
        %v1147 = vpop.trf.xlu0
        %v1148 = vpop.trf.xlu0
        %v1149 = vpop.trf.xlu0
        %v1150 = vpop.trf.xlu0
        %1151 = vxpose.xlu0.c.b16.start [1/8] %v1128, 128
        %1152 = vxpose.xlu0.c.b16.cont [2/8] 0, 128
        %1153 = vxpose.xlu0.c.b16.cont [3/8] 0, 128
        %1154 = vxpose.xlu0.c.b16.cont [4/8] 0, 128
        %1155 = vxpose.xlu0.c.b16.cont [5/8] 0, 128
        %1156 = vxpose.xlu0.c.b16.cont [6/8] 0, 128
        %1157 = vxpose.xlu0.c.b16.cont [7/8] 0, 128
        %1158 = vxpose.xlu0.c.b16.end [8/8] 0, 128
        %v1159 = vpop.trf.xlu0
        %v1160 = vpop.trf.xlu0
        %v1161 = vpop.trf.xlu0
        %v1162 = vpop.trf.xlu0
        %v1163 = vpop.trf.xlu0
        %v1164 = vpop.trf.xlu0
        %v1165 = vpop.trf.xlu0
        %v1166 = vpop.trf.xlu0
        %1167 = vxpose.xlu0.c.b16.start [1/8] %v1129, 128
        %1168 = vxpose.xlu0.c.b16.cont [2/8] 0, 128
        %1169 = vxpose.xlu0.c.b16.cont [3/8] 0, 128
        %1170 = vxpose.xlu0.c.b16.cont [4/8] 0, 128
        %1171 = vxpose.xlu0.c.b16.cont [5/8] 0, 128
        %1172 = vxpose.xlu0.c.b16.cont [6/8] 0, 128
        %1173 = vxpose.xlu0.c.b16.cont [7/8] 0, 128
        %1174 = vxpose.xlu0.c.b16.end [8/8] 0, 128
        %v1175 = vpop.trf.xlu0
        %v1176 = vpop.trf.xlu0
        %v1177 = vpop.trf.xlu0
        %v1178 = vpop.trf.xlu0
        %v1179 = vpop.trf.xlu0
        %v1180 = vpop.trf.xlu0
        %v1181 = vpop.trf.xlu0
        %v1182 = vpop.trf.xlu0
        %1183 = vxpose.xlu0.c.b16.start [1/8] %v1130, 128
        %1184 = vxpose.xlu0.c.b16.cont [2/8] 0, 128
        %1185 = vxpose.xlu0.c.b16.cont [3/8] 0, 128
        %1186 = vxpose.xlu0.c.b16.cont [4/8] 0, 128
        %1187 = vxpose.xlu0.c.b16.cont [5/8] 0, 128
        %1188 = vxpose.xlu0.c.b16.cont [6/8] 0, 128
        %1189 = vxpose.xlu0.c.b16.cont [7/8] 0, 128
        %1190 = vxpose.xlu0.c.b16.end [8/8] 0, 128
        %v1191 = vpop.trf.xlu0
        %v1192 = vpop.trf.xlu0
        %v1193 = vpop.trf.xlu0
        %v1194 = vpop.trf.xlu0
        %v1195 = vpop.trf.xlu0
        %v1196 = vpop.trf.xlu0
        %v1197 = vpop.trf.xlu0
        %v1198 = vpop.trf.xlu0
        %1199 = vxpose.xlu0.c.b16.start [1/8] %v1131, 128
        %1200 = vxpose.xlu0.c.b16.cont [2/8] 0, 128
        %1201 = vxpose.xlu0.c.b16.cont [3/8] 0, 128
        %1202 = vxpose.xlu0.c.b16.cont [4/8] 0, 128
        %1203 = vxpose.xlu0.c.b16.cont [5/8] 0, 128
        %1204 = vxpose.xlu0.c.b16.cont [6/8] 0, 128
        %1205 = vxpose.xlu0.c.b16.cont [7/8] 0, 128
        %1206 = vxpose.xlu0.c.b16.end [8/8] 0, 128
        %v1207 = vpop.trf.xlu0
        %v1208 = vpop.trf.xlu0
        %v1209 = vpop.trf.xlu0
        %v1210 = vpop.trf.xlu0
        %v1211 = vpop.trf.xlu0
        %v1212 = vpop.trf.xlu0
        %v1213 = vpop.trf.xlu0
        %v1214 = vpop.trf.xlu0
        %1215 = vxpose.xlu0.c.b16.start [1/8] %v1132, 128
        %1216 = vxpose.xlu0.c.b16.cont [2/8] 0, 128
        %1217 = vxpose.xlu0.c.b16.cont [3/8] 0, 128
        %1218 = vxpose.xlu0.c.b16.cont [4/8] 0, 128
        %1219 = vxpose.xlu0.c.b16.cont [5/8] 0, 128
        %1220 = vxpose.xlu0.c.b16.cont [6/8] 0, 128
        %1221 = vxpose.xlu0.c.b16.cont [7/8] 0, 128
        %1222 = vxpose.xlu0.c.b16.end [8/8] 0, 128
        %v1223 = vpop.trf.xlu0
        %v1224 = vpop.trf.xlu0
        %v1225 = vpop.trf.xlu0
        %v1226 = vpop.trf.xlu0
        %v1227 = vpop.trf.xlu0
        %v1228 = vpop.trf.xlu0
        %v1229 = vpop.trf.xlu0
        %v1230 = vpop.trf.xlu0
        %1231 = vxpose.xlu0.c.b16.start [1/8] %v1133, 128
        %1232 = vxpose.xlu0.c.b16.cont [2/8] 0, 128
        %1233 = vxpose.xlu0.c.b16.cont [3/8] 0, 128
        %1234 = vxpose.xlu0.c.b16.cont [4/8] 0, 128
        %1235 = vxpose.xlu0.c.b16.cont [5/8] 0, 128
        %1236 = vxpose.xlu0.c.b16.cont [6/8] 0, 128
        %1237 = vxpose.xlu0.c.b16.cont [7/8] 0, 128
        %1238 = vxpose.xlu0.c.b16.end [8/8] 0, 128
        %v1239 = vpop.trf.xlu0
        %v1240 = vpop.trf.xlu0
        %v1241 = vpop.trf.xlu0
        %v1242 = vpop.trf.xlu0
        %v1243 = vpop.trf.xlu0
        %v1244 = vpop.trf.xlu0
        %v1245 = vpop.trf.xlu0
        %v1246 = vpop.trf.xlu0
        %1247 = vxpose.xlu0.c.b16.start [1/8] %v1134, 128
        %1248 = vxpose.xlu0.c.b16.cont [2/8] 0, 128
        %1249 = vxpose.xlu0.c.b16.cont [3/8] 0, 128
        %1250 = vxpose.xlu0.c.b16.cont [4/8] 0, 128
        %1251 = vxpose.xlu0.c.b16.cont [5/8] 0, 128
        %1252 = vxpose.xlu0.c.b16.cont [6/8] 0, 128
        %1253 = vxpose.xlu0.c.b16.cont [7/8] 0, 128
        %1254 = vxpose.xlu0.c.b16.end [8/8] 0, 128
        %v1255 = vpop.trf.xlu0
        %v1256 = vpop.trf.xlu0
        %v1257 = vpop.trf.xlu0
        %v1258 = vpop.trf.xlu0
        %v1259 = vpop.trf.xlu0
        %v1260 = vpop.trf.xlu0
        %v1261 = vpop.trf.xlu0
        %v1262 = vpop.trf.xlu0
        %v1263 = vrot.slane %v1207, 4
        %v1264 = vsel %vm542, %v1263, %v1143
        %v1266 = vunpack.c.l.s4 1983009808
        %v1267 = vunpack.c.0.s8 %v1266
        %v1268 = vperm.slane %v1264, %v1267
        %v1269 = vrot.slane %v1239, 4
        %v1270 = vsel %vm542, %v1269, %v1175
        %v1272 = vunpack.c.l.s4 1983009808
        %v1273 = vunpack.c.0.s8 %v1272
        %v1274 = vperm.slane %v1270, %v1273
        %v1275 = vrot.slane %v1274, 4
        %v1276 = vsel %vm542, %v1275, %v1268
        %v1277 = vrot.slane %v1268, 4
        %v1278 = vsel %vm542, %v1274, %v1277
        %v1280 = vunpack.c.l.s4 1934713408
        %v1281 = vunpack.c.0.s8 %v1280
        %v1282 = vperm.slane %v1276, %v1281
        %v1284 = vunpack.c.l.s4 1934713408
        %v1285 = vunpack.c.0.s8 %v1284
        %v1286 = vperm.slane %v1278, %v1285
        %v1287 = vrot.slane %v1282, 4
        %v1288 = vsel %vm542, 0, %v1287
        %v1289 = vrot.slane %v1286, 4
        %v1290 = vsel %vm542, 0, %v1289
        %v1291 = vrot.slane %v1223, 4
        %v1292 = vsel %vm542, %v1291, %v1159
        %v1294 = vunpack.c.l.s4 1983009808
        %v1295 = vunpack.c.0.s8 %v1294
        %v1296 = vperm.slane %v1292, %v1295
        %v1297 = vrot.slane %v1255, 4
        %v1298 = vsel %vm542, %v1297, %v1191
        %v1300 = vunpack.c.l.s4 1983009808
        %v1301 = vunpack.c.0.s8 %v1300
        %v1302 = vperm.slane %v1298, %v1301
        %v1303 = vrot.slane %v1302, 4
        %v1304 = vsel %vm542, %v1303, %v1296
        %v1305 = vrot.slane %v1296, 4
        %v1306 = vsel %vm542, %v1302, %v1305
        %v1308 = vunpack.c.l.s4 1934713408
        %v1309 = vunpack.c.0.s8 %v1308
        %v1310 = vperm.slane %v1304, %v1309
        %v1312 = vunpack.c.l.s4 1934713408
        %v1313 = vunpack.c.0.s8 %v1312
        %v1314 = vperm.slane %v1306, %v1313
        %v1315 = vrot.slane %v1310, 4
        %v1316 = vsel %vm542, 0, %v1315
        %v1317 = vrot.slane %v1314, 4
        %v1318 = vsel %vm542, 0, %v1317
        %v1321 = vpack.i.b16 %v1310, %v1282
        %v1323 = vshrl.u32 %v1282, 16
        %v1324 = vshrl.u32 %v1310, 16
        %v1325 = vpack.i.b16 %v1324, %v1323
        %v1329 = vpack.i.b16 %v1316, %v1288
        %v1331 = vshrl.u32 %v1288, 16
        %v1332 = vshrl.u32 %v1316, 16
        %v1333 = vpack.i.b16 %v1332, %v1331
        %v1337 = vpack.i.b16 %v1314, %v1286
        %v1339 = vshrl.u32 %v1286, 16
        %v1340 = vshrl.u32 %v1314, 16
        %v1341 = vpack.i.b16 %v1340, %v1339
        %v1345 = vpack.i.b16 %v1318, %v1290
        %v1347 = vshrl.u32 %v1290, 16
        %v1348 = vshrl.u32 %v1318, 16
        %v1349 = vpack.i.b16 %v1348, %v1347
        %1351 = vxpose.xlu0.c.b16.start [1/8] %v1321, 128
        %1352 = vxpose.xlu0.c.b16.cont [2/8] 0, 128
        %1353 = vxpose.xlu0.c.b16.cont [3/8] 0, 128
        %1354 = vxpose.xlu0.c.b16.cont [4/8] 0, 128
        %1355 = vxpose.xlu0.c.b16.cont [5/8] 0, 128
        %1356 = vxpose.xlu0.c.b16.cont [6/8] 0, 128
        %1357 = vxpose.xlu0.c.b16.cont [7/8] 0, 128
        %1358 = vxpose.xlu0.c.b16.end [8/8] 0, 128
        %v1359 = vpop.trf.xlu0
        %v1360 = vpop.trf.xlu0
        %v1361 = vpop.trf.xlu0
        %v1362 = vpop.trf.xlu0
        %v1363 = vpop.trf.xlu0
        %v1364 = vpop.trf.xlu0
        %v1365 = vpop.trf.xlu0
        %v1366 = vpop.trf.xlu0
        %1367 = vxpose.xlu0.c.b16.start [1/8] %v1325, 128
        %1368 = vxpose.xlu0.c.b16.cont [2/8] 0, 128
        %1369 = vxpose.xlu0.c.b16.cont [3/8] 0, 128
        %1370 = vxpose.xlu0.c.b16.cont [4/8] 0, 128
        %1371 = vxpose.xlu0.c.b16.cont [5/8] 0, 128
        %1372 = vxpose.xlu0.c.b16.cont [6/8] 0, 128
        %1373 = vxpose.xlu0.c.b16.cont [7/8] 0, 128
        %1374 = vxpose.xlu0.c.b16.end [8/8] 0, 128
        %v1375 = vpop.trf.xlu0
        %v1376 = vpop.trf.xlu0
        %v1377 = vpop.trf.xlu0
        %v1378 = vpop.trf.xlu0
        %v1379 = vpop.trf.xlu0
        %v1380 = vpop.trf.xlu0
        %v1381 = vpop.trf.xlu0
        %v1382 = vpop.trf.xlu0
        %1383 = vxpose.xlu0.c.b16.start [1/8] %v1329, 128
        %1384 = vxpose.xlu0.c.b16.cont [2/8] 0, 128
        %1385 = vxpose.xlu0.c.b16.cont [3/8] 0, 128
        %1386 = vxpose.xlu0.c.b16.cont [4/8] 0, 128
        %1387 = vxpose.xlu0.c.b16.cont [5/8] 0, 128
        %1388 = vxpose.xlu0.c.b16.cont [6/8] 0, 128
        %1389 = vxpose.xlu0.c.b16.cont [7/8] 0, 128
        %1390 = vxpose.xlu0.c.b16.end [8/8] 0, 128
        %v1391 = vpop.trf.xlu0
        %v1392 = vpop.trf.xlu0
        %v1393 = vpop.trf.xlu0
        %v1394 = vpop.trf.xlu0
        %v1395 = vpop.trf.xlu0
        %v1396 = vpop.trf.xlu0
        %v1397 = vpop.trf.xlu0
        %v1398 = vpop.trf.xlu0
        %1399 = vxpose.xlu0.c.b16.start [1/8] %v1333, 128
        %1400 = vxpose.xlu0.c.b16.cont [2/8] 0, 128
        %1401 = vxpose.xlu0.c.b16.cont [3/8] 0, 128
        %1402 = vxpose.xlu0.c.b16.cont [4/8] 0, 128
        %1403 = vxpose.xlu0.c.b16.cont [5/8] 0, 128
        %1404 = vxpose.xlu0.c.b16.cont [6/8] 0, 128
        %1405 = vxpose.xlu0.c.b16.cont [7/8] 0, 128
        %1406 = vxpose.xlu0.c.b16.end [8/8] 0, 128
        %v1407 = vpop.trf.xlu0
        %v1408 = vpop.trf.xlu0
        %v1409 = vpop.trf.xlu0
        %v1410 = vpop.trf.xlu0
        %v1411 = vpop.trf.xlu0
        %v1412 = vpop.trf.xlu0
        %v1413 = vpop.trf.xlu0
        %v1414 = vpop.trf.xlu0
        %1415 = vxpose.xlu0.c.b16.start [1/8] %v1337, 128
        %1416 = vxpose.xlu0.c.b16.cont [2/8] 0, 128
        %1417 = vxpose.xlu0.c.b16.cont [3/8] 0, 128
        %1418 = vxpose.xlu0.c.b16.cont [4/8] 0, 128
        %1419 = vxpose.xlu0.c.b16.cont [5/8] 0, 128
        %1420 = vxpose.xlu0.c.b16.cont [6/8] 0, 128
        %1421 = vxpose.xlu0.c.b16.cont [7/8] 0, 128
        %1422 = vxpose.xlu0.c.b16.end [8/8] 0, 128
        %v1423 = vpop.trf.xlu0
        %v1424 = vpop.trf.xlu0
        %v1425 = vpop.trf.xlu0
        %v1426 = vpop.trf.xlu0
        %v1427 = vpop.trf.xlu0
        %v1428 = vpop.trf.xlu0
        %v1429 = vpop.trf.xlu0
        %v1430 = vpop.trf.xlu0
        %1431 = vxpose.xlu0.c.b16.start [1/8] %v1341, 128
        %1432 = vxpose.xlu0.c.b16.cont [2/8] 0, 128
        %1433 = vxpose.xlu0.c.b16.cont [3/8] 0, 128
        %1434 = vxpose.xlu0.c.b16.cont [4/8] 0, 128
        %1435 = vxpose.xlu0.c.b16.cont [5/8] 0, 128
        %1436 = vxpose.xlu0.c.b16.cont [6/8] 0, 128
        %1437 = vxpose.xlu0.c.b16.cont [7/8] 0, 128
        %1438 = vxpose.xlu0.c.b16.end [8/8] 0, 128
        %v1439 = vpop.trf.xlu0
        %v1440 = vpop.trf.xlu0
        %v1441 = vpop.trf.xlu0
        %v1442 = vpop.trf.xlu0
        %v1443 = vpop.trf.xlu0
        %v1444 = vpop.trf.xlu0
        %v1445 = vpop.trf.xlu0
        %v1446 = vpop.trf.xlu0
        %1447 = vxpose.xlu0.c.b16.start [1/8] %v1345, 128
        %1448 = vxpose.xlu0.c.b16.cont [2/8] 0, 128
        %1449 = vxpose.xlu0.c.b16.cont [3/8] 0, 128
        %1450 = vxpose.xlu0.c.b16.cont [4/8] 0, 128
        %1451 = vxpose.xlu0.c.b16.cont [5/8] 0, 128
        %1452 = vxpose.xlu0.c.b16.cont [6/8] 0, 128
        %1453 = vxpose.xlu0.c.b16.cont [7/8] 0, 128
        %1454 = vxpose.xlu0.c.b16.end [8/8] 0, 128
        %v1455 = vpop.trf.xlu0
        %v1456 = vpop.trf.xlu0
        %v1457 = vpop.trf.xlu0
        %v1458 = vpop.trf.xlu0
        %v1459 = vpop.trf.xlu0
        %v1460 = vpop.trf.xlu0
        %v1461 = vpop.trf.xlu0
        %v1462 = vpop.trf.xlu0
        %1463 = vxpose.xlu0.c.b16.start [1/8] %v1349, 128
        %1464 = vxpose.xlu0.c.b16.cont [2/8] 0, 128
        %1465 = vxpose.xlu0.c.b16.cont [3/8] 0, 128
        %1466 = vxpose.xlu0.c.b16.cont [4/8] 0, 128
        %1467 = vxpose.xlu0.c.b16.cont [5/8] 0, 128
        %1468 = vxpose.xlu0.c.b16.cont [6/8] 0, 128
        %1469 = vxpose.xlu0.c.b16.cont [7/8] 0, 128
        %1470 = vxpose.xlu0.c.b16.end [8/8] 0, 128
        %v1471 = vpop.trf.xlu0
        %v1472 = vpop.trf.xlu0
        %v1473 = vpop.trf.xlu0
        %v1474 = vpop.trf.xlu0
        %v1475 = vpop.trf.xlu0
        %v1476 = vpop.trf.xlu0
        %v1477 = vpop.trf.xlu0
        %v1478 = vpop.trf.xlu0
        %v1479 = vrot.slane %v1423, 4
        %v1480 = vsel %vm542, %v1479, %v1359
        %v1482 = vunpack.c.l.s4 1983009808
        %v1483 = vunpack.c.0.s8 %v1482
        %v1484 = vperm.slane %v1480, %v1483
        %v1485 = vrot.slane %v1455, 4
        %v1486 = vsel %vm542, %v1485, %v1391
        %v1488 = vunpack.c.l.s4 1983009808
        %v1489 = vunpack.c.0.s8 %v1488
        %v1490 = vperm.slane %v1486, %v1489
        %v1491 = vrot.slane %v1490, 4
        %v1492 = vsel %vm542, %v1491, %v1484
        %v1494 = vunpack.c.l.s4 1934713408
        %v1495 = vunpack.c.0.s8 %v1494
        %v1496 = vperm.slane %v1492, %v1495
        %v1497 = vrot.slane %v1496, 4
        %v1498 = vsel %vm542, 0, %v1497
        %v1499 = vrot.slane %v1439, 4
        %v1500 = vsel %vm542, %v1499, %v1375
        %v1502 = vunpack.c.l.s4 1983009808
        %v1503 = vunpack.c.0.s8 %v1502
        %v1504 = vperm.slane %v1500, %v1503
        %v1505 = vrot.slane %v1471, 4
        %v1506 = vsel %vm542, %v1505, %v1407
        %v1508 = vunpack.c.l.s4 1983009808
        %v1509 = vunpack.c.0.s8 %v1508
        %v1510 = vperm.slane %v1506, %v1509
        %v1511 = vrot.slane %v1510, 4
        %v1512 = vsel %vm542, %v1511, %v1504
        %v1514 = vunpack.c.l.s4 1934713408
        %v1515 = vunpack.c.0.s8 %v1514
        %v1516 = vperm.slane %v1512, %v1515
        %v1517 = vrot.slane %v1516, 4
        %v1518 = vsel %vm542, 0, %v1517
        %v1521 = vpack.i.b16 %v1516, %v1496
        %v1522 = vshrl.u32 %v1496, 16
        %v1523 = vshrl.u32 %v1516, 16
        %v1524 = vpack.i.b16 %v1523, %v1522
        %v1527 = vpack.i.b16 %v1518, %v1498
        %v1528 = vshrl.u32 %v1498, 16
        %v1529 = vshrl.u32 %v1518, 16
        %v1530 = vpack.i.b16 %v1529, %v1528
        %v1532 = vsel %vm990, %v1521, 0
        %v1535 = vsel %vm990, %v1123, 0
        %1537 = vmatpush.bf16.xpose.msra.mxu0 0
        %1538 = vmatpush.bf16.xpose.msra.mxu0 0
        %1539 = vmatpush.bf16.xpose.msra.mxu0 0
        %1540 = vmatpush.bf16.xpose.msra.mxu0 0
        %1541 = vmatpush.bf16.xpose.msra.mxu0 0
        %1542 = vmatpush.bf16.xpose.msra.mxu0 0
        %1543 = vmatpush.bf16.xpose.msra.mxu0 0
        %1544 = vmatpush.bf16.xpose.msra.mxu0 %v1535
        %1545 = vmatmul.bf16.gmra.mxu0 %v1532
        %v1546 = vpop.f32.mrf.mxu0
        %v1547 = vadd.f32 0.0, %v1546
        %v1548 = vpop.f32.mrf.mxu0
        %1549 = vdwg.mxu0
        %v1551 = vsel %vm990, %v1524, 0
        %v1554 = vsel %vm990, %v1124, 0
        %1556 = vmatpush.bf16.xpose.msra.mxu0 0
        %1557 = vmatpush.bf16.xpose.msra.mxu0 0
        %1558 = vmatpush.bf16.xpose.msra.mxu0 0
        %1559 = vmatpush.bf16.xpose.msra.mxu0 0
        %1560 = vmatpush.bf16.xpose.msra.mxu0 0
        %1561 = vmatpush.bf16.xpose.msra.mxu0 0
        %1562 = vmatpush.bf16.xpose.msra.mxu0 0
        %1563 = vmatpush.bf16.xpose.msra.mxu0 %v1554
        %1564 = vmatmul.bf16.gmra.mxu0 %v1551
        %v1565 = vpop.f32.mrf.mxu0
        %v1566 = vadd.f32 0.0, %v1565
        %v1567 = vpop.f32.mrf.mxu0
        %1568 = vdwg.mxu0
        %v1570 = vsel %vm990, %v1527, 0
        %v1573 = vsel %vm990, %v1125, 0
        %1575 = vmatpush.bf16.xpose.msra.mxu0 0
        %1576 = vmatpush.bf16.xpose.msra.mxu0 0
        %1577 = vmatpush.bf16.xpose.msra.mxu0 0
        %1578 = vmatpush.bf16.xpose.msra.mxu0 0
        %1579 = vmatpush.bf16.xpose.msra.mxu0 0
        %1580 = vmatpush.bf16.xpose.msra.mxu0 0
        %1581 = vmatpush.bf16.xpose.msra.mxu0 0
        %1582 = vmatpush.bf16.xpose.msra.mxu0 %v1573
        %1583 = vmatmul.bf16.gmra.mxu0 %v1570
        %v1584 = vpop.f32.mrf.mxu0
        %v1585 = vadd.f32 0.0, %v1584
        %v1586 = vpop.f32.mrf.mxu0
        %1587 = vdwg.mxu0
        %v1589 = vsel %vm990, %v1530, 0
        %v1592 = vsel %vm990, %v1126, 0
        %1594 = vmatpush.bf16.xpose.msra.mxu0 0
        %1595 = vmatpush.bf16.xpose.msra.mxu0 0
        %1596 = vmatpush.bf16.xpose.msra.mxu0 0
        %1597 = vmatpush.bf16.xpose.msra.mxu0 0
        %1598 = vmatpush.bf16.xpose.msra.mxu0 0
        %1599 = vmatpush.bf16.xpose.msra.mxu0 0
        %1600 = vmatpush.bf16.xpose.msra.mxu0 0
        %1601 = vmatpush.bf16.xpose.msra.mxu0 %v1592
        %1602 = vmatmul.bf16.gmra.mxu0 %v1589
        %v1603 = vpop.f32.mrf.mxu0
        %v1604 = vadd.f32 0.0, %v1603
        %v1605 = vpop.f32.mrf.mxu0
        %1606 = vdwg.mxu0
        %1607 = vxpose.xlu0.b32.start [1/16] %v1547, 128
        %1608 = vxpose.xlu0.b32.cont [2/16] 0.0, 128
        %1609 = vxpose.xlu0.b32.cont [3/16] 0.0, 128
        %1610 = vxpose.xlu0.b32.cont [4/16] 0.0, 128
        %1611 = vxpose.xlu0.b32.cont [5/16] 0.0, 128
        %1612 = vxpose.xlu0.b32.cont [6/16] 0.0, 128
        %1613 = vxpose.xlu0.b32.cont [7/16] 0.0, 128
        %1614 = vxpose.xlu0.b32.cont [8/16] 0.0, 128
        %1615 = vxpose.xlu0.b32.cont [9/16] 0.0, 128
        %1616 = vxpose.xlu0.b32.cont [10/16] 0.0, 128
        %1617 = vxpose.xlu0.b32.cont [11/16] 0.0, 128
        %1618 = vxpose.xlu0.b32.cont [12/16] 0.0, 128
        %1619 = vxpose.xlu0.b32.cont [13/16] 0.0, 128
        %1620 = vxpose.xlu0.b32.cont [14/16] 0.0, 128
        %1621 = vxpose.xlu0.b32.cont [15/16] 0.0, 128
        %1622 = vxpose.xlu0.b32.end [16/16] 0.0, 128
        %v1623 = vpop.trf.xlu0
        %v1624 = vpop.trf.xlu0
        %v1625 = vpop.trf.xlu0
        %v1626 = vpop.trf.xlu0
        %v1627 = vpop.trf.xlu0
        %v1628 = vpop.trf.xlu0
        %v1629 = vpop.trf.xlu0
        %v1630 = vpop.trf.xlu0
        %v1631 = vpop.trf.xlu0
        %v1632 = vpop.trf.xlu0
        %v1633 = vpop.trf.xlu0
        %v1634 = vpop.trf.xlu0
        %v1635 = vpop.trf.xlu0
        %v1636 = vpop.trf.xlu0
        %v1637 = vpop.trf.xlu0
        %v1638 = vpop.trf.xlu0
        %1639 = vxpose.xlu0.b32.start [1/16] %v1566, 128
        %1640 = vxpose.xlu0.b32.cont [2/16] 0.0, 128
        %1641 = vxpose.xlu0.b32.cont [3/16] 0.0, 128
        %1642 = vxpose.xlu0.b32.cont [4/16] 0.0, 128
        %1643 = vxpose.xlu0.b32.cont [5/16] 0.0, 128
        %1644 = vxpose.xlu0.b32.cont [6/16] 0.0, 128
        %1645 = vxpose.xlu0.b32.cont [7/16] 0.0, 128
        %1646 = vxpose.xlu0.b32.cont [8/16] 0.0, 128
        %1647 = vxpose.xlu0.b32.cont [9/16] 0.0, 128
        %1648 = vxpose.xlu0.b32.cont [10/16] 0.0, 128
        %1649 = vxpose.xlu0.b32.cont [11/16] 0.0, 128
        %1650 = vxpose.xlu0.b32.cont [12/16] 0.0, 128
        %1651 = vxpose.xlu0.b32.cont [13/16] 0.0, 128
        %1652 = vxpose.xlu0.b32.cont [14/16] 0.0, 128
        %1653 = vxpose.xlu0.b32.cont [15/16] 0.0, 128
        %1654 = vxpose.xlu0.b32.end [16/16] 0.0, 128
        %v1655 = vpop.trf.xlu0
        %v1656 = vpop.trf.xlu0
        %v1657 = vpop.trf.xlu0
        %v1658 = vpop.trf.xlu0
        %v1659 = vpop.trf.xlu0
        %v1660 = vpop.trf.xlu0
        %v1661 = vpop.trf.xlu0
        %v1662 = vpop.trf.xlu0
        %v1663 = vpop.trf.xlu0
        %v1664 = vpop.trf.xlu0
        %v1665 = vpop.trf.xlu0
        %v1666 = vpop.trf.xlu0
        %v1667 = vpop.trf.xlu0
        %v1668 = vpop.trf.xlu0
        %v1669 = vpop.trf.xlu0
        %v1670 = vpop.trf.xlu0
        %1671 = vxpose.xlu0.b32.start [1/16] %v1585, 128
        %1672 = vxpose.xlu0.b32.cont [2/16] 0.0, 128
        %1673 = vxpose.xlu0.b32.cont [3/16] 0.0, 128
        %1674 = vxpose.xlu0.b32.cont [4/16] 0.0, 128
        %1675 = vxpose.xlu0.b32.cont [5/16] 0.0, 128
        %1676 = vxpose.xlu0.b32.cont [6/16] 0.0, 128
        %1677 = vxpose.xlu0.b32.cont [7/16] 0.0, 128
        %1678 = vxpose.xlu0.b32.cont [8/16] 0.0, 128
        %1679 = vxpose.xlu0.b32.cont [9/16] 0.0, 128
        %1680 = vxpose.xlu0.b32.cont [10/16] 0.0, 128
        %1681 = vxpose.xlu0.b32.cont [11/16] 0.0, 128
        %1682 = vxpose.xlu0.b32.cont [12/16] 0.0, 128
        %1683 = vxpose.xlu0.b32.cont [13/16] 0.0, 128
        %1684 = vxpose.xlu0.b32.cont [14/16] 0.0, 128
        %1685 = vxpose.xlu0.b32.cont [15/16] 0.0, 128
        %1686 = vxpose.xlu0.b32.end [16/16] 0.0, 128
        %v1687 = vpop.trf.xlu0
        %v1688 = vpop.trf.xlu0
        %v1689 = vpop.trf.xlu0
        %v1690 = vpop.trf.xlu0
        %v1691 = vpop.trf.xlu0
        %v1692 = vpop.trf.xlu0
        %v1693 = vpop.trf.xlu0
        %v1694 = vpop.trf.xlu0
        %v1695 = vpop.trf.xlu0
        %v1696 = vpop.trf.xlu0
        %v1697 = vpop.trf.xlu0
        %v1698 = vpop.trf.xlu0
        %v1699 = vpop.trf.xlu0
        %v1700 = vpop.trf.xlu0
        %v1701 = vpop.trf.xlu0
        %v1702 = vpop.trf.xlu0
        %1703 = vxpose.xlu0.b32.start [1/16] %v1604, 128
        %1704 = vxpose.xlu0.b32.cont [2/16] 0.0, 128
        %1705 = vxpose.xlu0.b32.cont [3/16] 0.0, 128
        %1706 = vxpose.xlu0.b32.cont [4/16] 0.0, 128
        %1707 = vxpose.xlu0.b32.cont [5/16] 0.0, 128
        %1708 = vxpose.xlu0.b32.cont [6/16] 0.0, 128
        %1709 = vxpose.xlu0.b32.cont [7/16] 0.0, 128
        %1710 = vxpose.xlu0.b32.cont [8/16] 0.0, 128
        %1711 = vxpose.xlu0.b32.cont [9/16] 0.0, 128
        %1712 = vxpose.xlu0.b32.cont [10/16] 0.0, 128
        %1713 = vxpose.xlu0.b32.cont [11/16] 0.0, 128
        %1714 = vxpose.xlu0.b32.cont [12/16] 0.0, 128
        %1715 = vxpose.xlu0.b32.cont [13/16] 0.0, 128
        %1716 = vxpose.xlu0.b32.cont [14/16] 0.0, 128
        %1717 = vxpose.xlu0.b32.cont [15/16] 0.0, 128
        %1718 = vxpose.xlu0.b32.end [16/16] 0.0, 128
        %v1719 = vpop.trf.xlu0
        %v1720 = vpop.trf.xlu0
        %v1721 = vpop.trf.xlu0
        %v1722 = vpop.trf.xlu0
        %v1723 = vpop.trf.xlu0
        %v1724 = vpop.trf.xlu0
        %v1725 = vpop.trf.xlu0
        %v1726 = vpop.trf.xlu0
        %v1727 = vpop.trf.xlu0
        %v1728 = vpop.trf.xlu0
        %v1729 = vpop.trf.xlu0
        %v1730 = vpop.trf.xlu0
        %v1731 = vpop.trf.xlu0
        %v1732 = vpop.trf.xlu0
        %v1733 = vpop.trf.xlu0
        %v1734 = vpop.trf.xlu0
        %v1735 = vrot.slane %v1687, 4
        %v1736 = vsel %vm326, %v1735, %v1623
        %v1737 = vrot.slane %v1623, 4
        %v1738 = vsel %vm326, %v1687, %v1737
        %v1740 = vunpack.c.l.s4 1983009808
        %v1741 = vunpack.c.0.s8 %v1740
        %v1742 = vperm.slane %v1736, %v1741
        %v1744 = vunpack.c.l.s4 1983009808
        %v1745 = vunpack.c.0.s8 %v1744
        %v1746 = vperm.slane %v1738, %v1745
        %v1747 = vrot.slane %v1719, 4
        %v1748 = vsel %vm326, %v1747, %v1655
        %v1749 = vrot.slane %v1655, 4
        %v1750 = vsel %vm326, %v1719, %v1749
        %v1752 = vunpack.c.l.s4 1983009808
        %v1753 = vunpack.c.0.s8 %v1752
        %v1754 = vperm.slane %v1748, %v1753
        %v1756 = vunpack.c.l.s4 1983009808
        %v1757 = vunpack.c.0.s8 %v1756
        %v1758 = vperm.slane %v1750, %v1757
        %v1759 = vrot.slane %v1754, 4
        %v1760 = vsel %vm326, %v1759, %v1742
        %v1761 = vrot.slane %v1742, 4
        %v1762 = vsel %vm326, %v1754, %v1761
        %v1764 = vunpack.c.l.s4 1934713408
        %v1765 = vunpack.c.0.s8 %v1764
        %v1766 = vperm.slane %v1760, %v1765
        %v1768 = vunpack.c.l.s4 1934713408
        %v1769 = vunpack.c.0.s8 %v1768
        %v1770 = vperm.slane %v1762, %v1769
        %v1771 = vrot.slane %v1758, 4
        %v1772 = vsel %vm326, %v1771, %v1746
        %v1773 = vrot.slane %v1746, 4
        %v1774 = vsel %vm326, %v1758, %v1773
        %v1776 = vunpack.c.l.s4 1934713408
        %v1777 = vunpack.c.0.s8 %v1776
        %v1778 = vperm.slane %v1772, %v1777
        %v1780 = vunpack.c.l.s4 1934713408
        %v1781 = vunpack.c.0.s8 %v1780
        %v1782 = vperm.slane %v1774, %v1781
        %v1783 = vrot.slane %v1766, 4
        %v1784 = vsel %vm326, 0.0, %v1783
        %v1785 = vrot.slane %v1770, 4
        %v1786 = vsel %vm326, 0.0, %v1785
        %v1787 = vrot.slane %v1778, 4
        %v1788 = vsel %vm326, 0.0, %v1787
        %v1789 = vrot.slane %v1782, 4
        %v1790 = vsel %vm326, 0.0, %v1789
        %v1791 = vsel %vm326, %v1785, %v1766
        %v1793 = vunpack.c.l.s4 1983009808
        %v1794 = vunpack.c.0.s8 %v1793
        %v1795 = vperm.slane %v1791, %v1794
        %v1796 = vrot.slane %v1786, 4
        %v1797 = vsel %vm326, %v1796, %v1784
        %v1799 = vunpack.c.l.s4 1983009808
        %v1800 = vunpack.c.0.s8 %v1799
        %v1801 = vperm.slane %v1797, %v1800
        %v1802 = vsel %vm326, %v1789, %v1778
        %v1804 = vunpack.c.l.s4 1983009808
        %v1805 = vunpack.c.0.s8 %v1804
        %v1806 = vperm.slane %v1802, %v1805
        %v1807 = vrot.slane %v1790, 4
        %v1808 = vsel %vm326, %v1807, %v1788
        %v1810 = vunpack.c.l.s4 1983009808
        %v1811 = vunpack.c.0.s8 %v1810
        %v1812 = vperm.slane %v1808, %v1811
        %v1813 = vrot.slane %v1801, 4
        %v1814 = vsel %vm326, %v1813, %v1795
        %v1815 = vrot.slane %v1795, 4
        %v1816 = vsel %vm326, %v1801, %v1815
        %v1818 = vunpack.c.l.s4 1934713408
        %v1819 = vunpack.c.0.s8 %v1818
        %v1820 = vperm.slane %v1814, %v1819
        %v1822 = vunpack.c.l.s4 1934713408
        %v1823 = vunpack.c.0.s8 %v1822
        %v1824 = vperm.slane %v1816, %v1823
        %v1825 = vrot.slane %v1812, 4
        %v1826 = vsel %vm326, %v1825, %v1806
        %v1827 = vrot.slane %v1806, 4
        %v1828 = vsel %vm326, %v1812, %v1827
        %v1830 = vunpack.c.l.s4 1934713408
        %v1831 = vunpack.c.0.s8 %v1830
        %v1832 = vperm.slane %v1826, %v1831
        %v1834 = vunpack.c.l.s4 1934713408
        %v1835 = vunpack.c.0.s8 %v1834
        %v1836 = vperm.slane %v1828, %v1835
        %v1837 = vrot.slane %v1832, 4
        %v1838 = vsel %vm326, %v1837, %v1820
        %v1839 = vrot.slane %v1820, 4
        %v1840 = vsel %vm326, %v1832, %v1839
        %v1841 = vrot.slane %v1836, 4
        %v1842 = vsel %vm326, %v1841, %v1824
        %v1843 = vrot.slane %v1824, 4
        %v1844 = vsel %vm326, %v1836, %v1843
        %1846 = vrot.lane.b32.xlu0 %v1840, 8
        %v1847 = vpop.permute.xlu0 %1846
        %1850 = vrot.lane.b32.xlu0 %v1842, 16
        %v1851 = vpop.permute.xlu0 %1850
        %1854 = vrot.lane.b32.xlu0 %v1844, 24
        %v1855 = vpop.permute.xlu0 %1854
        %v1857 = vsel %vm990, %v1838, %v1847
        %vm1858 = vcmask 130048
        %v1859 = vsel %vm1858, %v1857, %v1851
        %vm1860 = vcmask 195584
        %v1861 = vsel %vm1860, %v1859, %v1855
        %v1862 = vpack.c.bf16 %v1861, %v1861
        %v1863 = vld [vmem:[#allocation7] sm:$0xf]
        %v1864 = vld [vmem:[#allocation7 + $0x4] sm:$0xf]
        %v1865 = vld [vmem:[#allocation7 + $0x8] sm:$0xf]
        %v1866 = vld [vmem:[#allocation7 + $0xc] sm:$0xf]
        %v1867 = vld [vmem:[%s4] sm:$0x1]
        %v1869 = vperm.slane %v1867, 0
        %v1875 = vunpack.c.l.b16 %v1863
        %v1876 = vunpack.c.l.b16 %v1864
        %v1877 = vunpack.c.l.b16 %v1865
        %v1878 = vunpack.c.l.b16 %v1866
        %v1879 = vpack.c.b16 %v1876, %v1875
        %v1880 = vpack.c.b16 %v1878, %v1877
        %v1884 = vsel %vm297, %v1862, 0
        %1886 = vmatpush.bf16.msra.mxu0 0
        %1887 = vmatpush.bf16.msra.mxu0 0
        %1888 = vmatpush.bf16.msra.mxu0 0
        %1889 = vmatpush.bf16.msra.mxu0 0
        %1890 = vmatpush.bf16.msra.mxu0 0
        %1891 = vmatpush.bf16.msra.mxu0 0
        %1892 = vmatpush.bf16.msra.mxu0 %v1880
        %1893 = vmatpush.bf16.msra.mxu0 %v1879
        %1894 = vmatmul.bf16.gmra.mxu0 %v1884
        %v1895 = vpop.f32.mrf.mxu0
        %v1896 = vadd.f32 %v1869, %v1895
        %v1897 = vpop.f32.mrf.mxu0
        %1898 = vdwg.mxu0
        %1899 = vst.msk [vmem:[%s274] sm:$0xff] %vm297, %v1896
        %s1900 = sand.u32 %s141, 1
        %s1901 = scalar_lea.sflag [#allocation4], %s1900
        %s1902 = sand.u32 %s141, 1
        %s1903 = smul.addr %s1902, 8
        %s1904 = scalar_lea.vmem [#allocation8], %s1903
        // Predicated region
        $region53: #{tpu_custom_call.1} parent=39 // pred_check
          %p1905 = pneg %p151
        $region54: #{tpu_custom_call.1} parent=39 // pred_check_branch
          %1907 = sbr.rel (%p1905) target = $region56
        $region55: #{tpu_custom_call.1} parent=39 // pred_region
          %1909 = vsyncadd %s1901, 0
          %s1910 = smul.addr %s23, 8
          %s1911 = scalar_lea.hbm %s5, %s1910
          %s1913 = sshll.u32 %s1904, 4
          %s1914 = int_to_ptr.vmem [resolvable:$true] %s1913
          %s1915 = sshll.u32 %s1911, 4
          %s1916 = int_to_ptr.hbm [resolvable:$true] %s1915
          %1918 = dma.vmem_to_hbm [thread:$0]  %s1914, 128, %s1916, %s1901
        $region56: #{tpu_custom_call.1} parent=39 // pred_fallthru
          _
      $region40: #{tpu_custom_call.1} parent=5 // pred_fallthru
        _
      %p1919 = scmp.le.s32.totalorder 2, %s18
      // Predicated region
      $region57: #{tpu_custom_call.1} parent=5 // pred_check
        %p1920 = pneg %p1919
      $region58: #{tpu_custom_call.1} parent=5 // pred_check_branch
        %1922 = sbr.rel (%p1920) target = $region60
      $region59: #{tpu_custom_call.1} parent=5 // pred_region
        %s1923 = ssub.s32 %s18, 2
        // Predicated region
        $region61: #{tpu_custom_call.1} parent=59 // pred_check
          %p1924 = pneg %p157
        $region62: #{tpu_custom_call.1} parent=59 // pred_check_branch
          %1926 = sbr.rel (%p1924) target = $region64
        $region63: #{tpu_custom_call.1} parent=59 // pred_region
          %s1927 = sand.u32 %s142, 1
          %s1928 = scalar_lea.sflag [#allocation4], %s1927
          %s1929 = sand.u32 %s142, 1
          %s1930 = smul.addr %s1929, 8
          %s1931 = scalar_lea.vmem [#allocation8], %s1930
          %1933 = dma.done %s1928, 128
        $region64: #{tpu_custom_call.1} parent=59 // pred_fallthru
          _
      $region60: #{tpu_custom_call.1} parent=5 // pred_fallthru
        _
    $region6: #{tpu_custom_call.1} parent=1 // loop_footer
      %s22 = sadd.s32 1, %s18
    $region7: #{tpu_custom_call.1} parent=1 // loop_footer_branch
      %17 = sbr.rel target = $region3
    $region8: #{tpu_custom_call.1} parent=1 // loop_exit
      _
    %1934 = vsyncpa [#allocation3], 1
    %s1935 = scalar_lea.sflag [#allocation3], 1
    %1936 = vsyncpa %s1935, 1
    %1937 = vsyncpa [#allocation6], 1
    %1938 = vsyncpa [#allocation4], 1
    %s1939 = scalar_lea.sflag [#allocation4], 1
    %1940 = vsyncpa %s1939, 1

</llo_original>
